<compile_context>
chip_gen: v7x
topology: tpu7x:2x2x1
jax: 0.10.0
libtpu: 0.0.40
codegen_flags: <defaults>
</compile_context>

<pallas_src>
import functools

import jax
import jax.numpy as jnp
from jax import lax
from jax.experimental import pallas as pl
from jax.experimental.pallas import tpu as pltpu

ALPHA = 0.2            # weight of -log(conf) regularizer in the criterion
NORM_EPS = 1e-8        # d.clip(min=1e-8) in apply_log_to_norm
LANE_W = 512           # lane-dense row width (4 x native 128-lane groups)
MIN_TILE_ROWS = 32     # int8 mask native sublane tiling (32, 128)


def _tile_params():
    """(max_tile_rows, target_grid) per TPU generation."""
    try:
        kind = jax.devices()[0].device_kind.lower()
    except Exception:  # pragma: no cover - CPU/interpret fallback
        kind = ""
    if "v7" in kind:
        # 2 TensorCores, 3.2 TB/s: bigger tiles, keep >= 2 steps per core.
        return 512, 4
    # Single-TC v5e / v6e (and unknown): 256-row f32 tiles double-buffered stay
    # under v5e's 16 MiB scoped-VMEM default; grid only needs to keep the DMA
    # pipeline full.
    return 256, 4


def _choose_tile_rows(rows, max_tile, target_grid):
    """Largest tile <= max_tile giving ~target_grid steps; prefer exact divisors of
    `rows` (no padding -> the output reshape back to (B,H,W) is a free view)."""
    desired = max(MIN_TILE_ROWS, min(max_tile, -(-rows // target_grid)))
    desired = -(-desired // MIN_TILE_ROWS) * MIN_TILE_ROWS
    lo = max(MIN_TILE_ROWS, desired // 2)
    for t in range(desired, lo - 1, -MIN_TILE_ROWS):
        if rows % t == 0:
            return t
    return desired


def _ray_completion_kernel(pred_ref, gt_ref, conf_ref, mask_ref, *out_refs,
                           loss_in_log, with_map):
    # pred_ref/gt_ref: (3, TR, LANE_W); conf_ref: (TR, LANE_W); mask_ref: (TR, LANE_W) int8
    p = pred_ref[...].astype(jnp.float32)
    g = gt_ref[...].astype(jnp.float32)

    if loss_in_log:
        # apply_log_to_norm: x <- x / clip(||x||, 1e-8) * log1p(||x||)
        # sqrt / rsqrt / log1p all go to the EUP slot (free for this HBM-bound kernel).
        def _log_norm(x):
            ssq = jnp.sum(x * x, axis=0, keepdims=True)                 # ||x||^2
            norm = jnp.sqrt(ssq)                                        # exact ||x|| for log1p
            inv = lax.rsqrt(jnp.maximum(ssq, NORM_EPS * NORM_EPS))      # 1 / clip(||x||, eps)
            return x * (inv * jnp.log1p(norm))
        p = _log_norm(p)
        g = _log_norm(g)

    diff = p - g
    # TODO(synk): sqrt has undefined grad at diff==0; forward value matches PyTorch exactly.
    dist = jnp.sqrt(jnp.sum(diff * diff, axis=0))                       # (TR, LANE_W)

    conf = conf_ref[...].astype(jnp.float32)
    loss = conf * dist - ALPHA * jnp.log(conf)                          # criterion, reduction='none'

    valid = mask_ref[...] != 0
    loss = jnp.where(valid, loss, 0.0)

    if with_map:
        out_refs[0][...] = loss
        stats_ref = out_refs[1]
    else:
        stats_ref = out_refs[0]

    # Per-tile stats: [0,0] = number of valid pixels, [0,1] = sum of masked loss.
    cnt = jnp.sum(valid.astype(jnp.float32))       # exact: tile has <= 2^18 px < 2^24
    lsum = jnp.sum(loss)
    r = lax.broadcasted_iota(jnp.int32, (8, 128), 0)
    c = lax.broadcasted_iota(jnp.int32, (8, 128), 1)
    tile = jnp.where((r == 0) & (c == 0), cnt, 0.0)
    tile = jnp.where((r == 0) & (c == 1), lsum, tile)
    stats_ref[...] = tile


@functools.partial(jax.jit, static_argnames=("loss_in_log", "with_map"))
def ray_completion_loss(pred_pts, pred_conf, gt_pts, valid_mask, *,
                        loss_in_log=True, with_map=True):
    """pred_pts/gt_pts: (B,H,W,3) f32/bf16; pred_conf: (B,H,W) (>0); valid_mask: (B,H,W) bool.

    Returns a dict with:
      'num_valid'  : int32 count of valid pixels (0 corresponds to PyTorch returning None)
      'loss_sum'   : sum of the per-point losses over valid pixels
      'loss_mean'  : loss_sum / max(num_valid, 1)
      'loss_points', 'loss' (only when with_map=True): (B,H,W) f32 map with zeros at
          invalid pixels; map[valid_mask] equals PyTorch's per-point loss vector.
    """
    B, H, W, _ = pred_pts.shape
    n = B * H * W
    rows = -(-n // LANE_W)
    max_tile, target_grid = _tile_params()
    tile_rows = _choose_tile_rows(rows, max_tile, target_grid)
    rows_pad = -(-rows // tile_rows) * tile_rows
    n_pad = rows_pad * LANE_W
    num_tiles = rows_pad // tile_rows

    def pack_pts(x):                                   # (B,H,W,3) -> (3, rows_pad, LANE_W), dtype preserved
        x = x.reshape(n, 3).T                          # the one unavoidable HBM repack
        x = jnp.pad(x, ((0, 0), (0, n_pad - n)))
        return x.reshape(3, rows_pad, LANE_W)

    def pack_scalar(x, pad_value, dtype):              # (B,H,W) -> (rows_pad, LANE_W)
        x = x.reshape(n).astype(dtype)
        x = jnp.pad(x, (0, n_pad - n), constant_values=pad_value)
        return x.reshape(rows_pad, LANE_W)

    p = pack_pts(pred_pts)
    g = pack_pts(gt_pts)
    c = pack_scalar(pred_conf, 1.0, pred_conf.dtype)   # pad conf with 1.0 so log() stays finite
    m = pack_scalar(valid_mask, 0, jnp.int8)

    stats_shape = jax.ShapeDtypeStruct((num_tiles * 8, 128), jnp.float32)
    stats_spec = pl.BlockSpec((8, 128), lambda i: (i, 0))
    if with_map:
        out_shape = (jax.ShapeDtypeStruct((rows_pad, LANE_W), jnp.float32), stats_shape)
        out_specs = (pl.BlockSpec((tile_rows, LANE_W), lambda i: (i, 0)), stats_spec)
    else:
        out_shape = stats_shape
        out_specs = stats_spec

    kernel = functools.partial(_ray_completion_kernel,
                               loss_in_log=loss_in_log, with_map=with_map)

    outs = pl.pallas_call(
        kernel,
        out_shape=out_shape,
        grid_spec=pltpu.PrefetchScalarGridSpec(
            num_scalar_prefetch=0,
            grid=(num_tiles,),
            in_specs=[
                pl.BlockSpec((3, tile_rows, LANE_W), lambda i: (0, i, 0)),
                pl.BlockSpec((3, tile_rows, LANE_W), lambda i: (0, i, 0)),
                pl.BlockSpec((tile_rows, LANE_W), lambda i: (i, 0)),
                pl.BlockSpec((tile_rows, LANE_W), lambda i: (i, 0)),
            ],
            out_specs=out_specs,
        ),
        compiler_params=pltpu.CompilerParams(
            dimension_semantics=("parallel",)),
    )(p, g, c, m)

    if with_map:
        out_map, stats = outs
    else:
        stats = outs

    stats = stats.reshape(num_tiles, 8, 128)
    num_valid = jnp.sum(stats[:, 0, 0].astype(jnp.int32))      # per-tile counts are exact f32 ints
    loss_sum = jnp.sum(stats[:, 0, 1])
    loss_mean = loss_sum / jnp.maximum(num_valid, 1).astype(jnp.float32)

    result = {"num_valid": num_valid, "loss_sum": loss_sum, "loss_mean": loss_mean}
    if with_map:
        if n_pad == n:
            loss_map = out_map.reshape(B, H, W)                 # free view: no padded slice copy
        else:
            loss_map = out_map.reshape(-1)[:n].reshape(B, H, W)
        result["loss_points"] = loss_map
        result["loss"] = loss_map
    return result


def _reference(pred_pts, pred_conf, gt_pts, valid_mask, loss_in_log):
    """Pure-JAX mirror of the PyTorch forward (per-pixel, zeros at invalid pixels)."""
    p = pred_pts.astype(jnp.float32)
    g = gt_pts.astype(jnp.float32)
    if loss_in_log:
        dp = jnp.linalg.norm(p, axis=-1, keepdims=True)
        p = p / jnp.maximum(dp, NORM_EPS) * jnp.log1p(dp)
        dg = jnp.linalg.norm(g, axis=-1, keepdims=True)
        g = g / jnp.maximum(dg, NORM_EPS) * jnp.log1p(dg)
    dist = jnp.linalg.norm(p - g, axis=-1)
    conf = pred_conf.astype(jnp.float32)
    loss = conf * dist - ALPHA * jnp.log(conf)
    return jnp.where(valid_mask, loss, 0.0)


if __name__ == "__main__":
    key = jax.random.PRNGKey(0)
    kp, kg, kc, km = jax.random.split(key, 4)

    B, H, W = 2, 16, 16
    gt_pts = jax.random.normal(kg, (B, H, W, 3), dtype=jnp.float32)
    pred_pts = gt_pts + 0.1 * jax.random.normal(kp, (B, H, W, 3), dtype=jnp.float32)
    pred_conf = 1.0 + jnp.exp(0.1 * jax.random.normal(kc, (B, H, W), dtype=jnp.float32))
    valid_mask = jax.random.uniform(km, (B, H, W)) > 0.3

    for lil in (True, False):
        out = ray_completion_loss(pred_pts, pred_conf, gt_pts, valid_mask, loss_in_log=lil)
        loss_map = jax.block_until_ready(out["loss"])
        ref = _reference(pred_pts, pred_conf, gt_pts, valid_mask, lil)
        assert jnp.allclose(loss_map, ref, rtol=1e-4, atol=1e-5), f"mismatch (loss_in_log={lil})"
        assert int(out["num_valid"]) == int(jnp.sum(valid_mask)), "num_valid mismatch"
        assert jnp.allclose(out["loss_sum"], ref.sum(), rtol=1e-4, atol=1e-4), "loss_sum mismatch"

        # Reduced mode (no per-pixel map written) must agree with the map path.
        red = ray_completion_loss(pred_pts, pred_conf, gt_pts, valid_mask,
                                  loss_in_log=lil, with_map=False)
        red_sum = jax.block_until_ready(red["loss_sum"])
        assert "loss" not in red and "loss_points" not in red
        assert int(red["num_valid"]) == int(jnp.sum(valid_mask)), "reduced num_valid mismatch"
        assert jnp.allclose(red_sum, ref.sum(), rtol=1e-4, atol=1e-4), "reduced loss_sum mismatch"

    print("KERNEL_OK")
</pallas_src>

<mosaic_0001>
module attributes {stable_mosaic.version = 11 : i64} {
  func.func @_ray_completion_kernel(%arg0: i32, %arg1: memref<3x32x512xf32, #tpu.memory_space<vmem>>, %arg2: memref<3x32x512xf32, #tpu.memory_space<vmem>>, %arg3: memref<32x512xf32, #tpu.memory_space<vmem>>, %arg4: memref<32x512xi8, #tpu.memory_space<vmem>>, %arg5: memref<32x512xf32, #tpu.memory_space<vmem>>, %arg6: memref<8x128xf32, #tpu.memory_space<vmem>>) attributes {dimension_semantics = [#tpu.dimension_semantics<parallel>], iteration_bounds = array<i64: 1>, scalar_prefetch = 0 : i64, scratch_operands = 0 : i64, tpu.core_type = #tpu.core_type<tc>, window_params = [{transform_indices = @transform_0, window_bounds = array<i64: 3, 32, 512>}, {transform_indices = @transform_1, window_bounds = array<i64: 3, 32, 512>}, {transform_indices = @transform_2, window_bounds = array<i64: 32, 512>}, {transform_indices = @transform_3, window_bounds = array<i64: 32, 512>}, {transform_indices = @transform_4, window_bounds = array<i64: 32, 512>}, {transform_indices = @transform_5, window_bounds = array<i64: 8, 128>}]} {
    %c0 = arith.constant 0 : index
    %c0_0 = arith.constant 0 : index
    %c0_1 = arith.constant 0 : index
    %0 = vector.load %arg1[%c0, %c0_0, %c0_1] : memref<3x32x512xf32, #tpu.memory_space<vmem>>, vector<3x32x512xf32>
    %c0_2 = arith.constant 0 : index
    %c0_3 = arith.constant 0 : index
    %c0_4 = arith.constant 0 : index
    %1 = vector.load %arg2[%c0_2, %c0_3, %c0_4] : memref<3x32x512xf32, #tpu.memory_space<vmem>>, vector<3x32x512xf32>
    %2 = arith.mulf %0, %0 : vector<3x32x512xf32>
    %cst = arith.constant dense<0.000000e+00> : vector<32x512xf32>
    %3 = vector.multi_reduction <add>, %2, %cst [0] : vector<3x32x512xf32> to vector<32x512xf32>
    %4 = vector.shape_cast %3 : vector<32x512xf32> to vector<1x32x512xf32>
    %5 = math.sqrt %4 : vector<1x32x512xf32>
    %cst_5 = arith.constant 1.000000e-16 : f32
    %6 = vector.broadcast %cst_5 : f32 to vector<1x32x512xf32>
    %7 = arith.maximumf %4, %6 : vector<1x32x512xf32>
    %8 = math.rsqrt %7 : vector<1x32x512xf32>
    %9 = math.log1p %5 : vector<1x32x512xf32>
    %10 = arith.mulf %8, %9 : vector<1x32x512xf32>
    %11 = vector.broadcast %10 : vector<1x32x512xf32> to vector<3x32x512xf32>
    %12 = arith.mulf %0, %11 : vector<3x32x512xf32>
    %13 = arith.mulf %1, %1 : vector<3x32x512xf32>
    %cst_6 = arith.constant dense<0.000000e+00> : vector<32x512xf32>
    %14 = vector.multi_reduction <add>, %13, %cst_6 [0] : vector<3x32x512xf32> to vector<32x512xf32>
    %15 = vector.shape_cast %14 : vector<32x512xf32> to vector<1x32x512xf32>
    %16 = math.sqrt %15 : vector<1x32x512xf32>
    %cst_7 = arith.constant 1.000000e-16 : f32
    %17 = vector.broadcast %cst_7 : f32 to vector<1x32x512xf32>
    %18 = arith.maximumf %15, %17 : vector<1x32x512xf32>
    %19 = math.rsqrt %18 : vector<1x32x512xf32>
    %20 = math.log1p %16 : vector<1x32x512xf32>
    %21 = arith.mulf %19, %20 : vector<1x32x512xf32>
    %22 = vector.broadcast %21 : vector<1x32x512xf32> to vector<3x32x512xf32>
    %23 = arith.mulf %1, %22 : vector<3x32x512xf32>
    %24 = arith.subf %12, %23 : vector<3x32x512xf32>
    %25 = arith.mulf %24, %24 : vector<3x32x512xf32>
    %cst_8 = arith.constant dense<0.000000e+00> : vector<32x512xf32>
    %26 = vector.multi_reduction <add>, %25, %cst_8 [0] : vector<3x32x512xf32> to vector<32x512xf32>
    %27 = math.sqrt %26 : vector<32x512xf32>
    %c0_9 = arith.constant 0 : index
    %c0_10 = arith.constant 0 : index
    %28 = vector.load %arg3[%c0_9, %c0_10] : memref<32x512xf32, #tpu.memory_space<vmem>>, vector<32x512xf32>
    %29 = arith.mulf %28, %27 : vector<32x512xf32>
    %30 = math.log %28 : vector<32x512xf32>
    %cst_11 = arith.constant 2.000000e-01 : f32
    %31 = vector.broadcast %cst_11 : f32 to vector<32x512xf32>
    %32 = arith.mulf %31, %30 : vector<32x512xf32>
    %33 = arith.subf %29, %32 : vector<32x512xf32>
    %c0_12 = arith.constant 0 : index
    %c0_13 = arith.constant 0 : index
    %34 = vector.load %arg4[%c0_12, %c0_13] : memref<32x512xi8, #tpu.memory_space<vmem>>, vector<32x512xi8>
    %c0_i8 = arith.constant 0 : i8
    %35 = vector.broadcast %c0_i8 : i8 to vector<32x512xi8>
    %36 = arith.cmpi ne, %34, %35 : vector<32x512xi8>
    %cst_14 = arith.constant 0.000000e+00 : f32
    %37 = vector.broadcast %cst_14 : f32 to vector<32x512xf32>
    %38 = arith.select %36, %33, %37 : vector<32x512xi1>, vector<32x512xf32>
    %c0_15 = arith.constant 0 : index
    %c0_16 = arith.constant 0 : index
    %39 = vector.load %arg5[%c0_15, %c0_16] : memref<32x512xf32, #tpu.memory_space<vmem>>, vector<32x512xf32>
    tpu.vector_store %arg5[%c0_15, %c0_16], %38 {strides = array<i32>} : memref<32x512xf32, #tpu.memory_space<vmem>>, vector<32x512xf32>,
    %40 = arith.extui %36 : vector<32x512xi1> to vector<32x512xi32>
    %41 = arith.sitofp %40 : vector<32x512xi32> to vector<32x512xf32>
    %42 = vector.shape_cast %41 : vector<32x512xf32> to vector<1x32x512xf32>
    %cst_17 = arith.constant dense<0.000000e+00> : vector<1xf32>
    %43 = vector.multi_reduction <add>, %42, %cst_17 [1, 2] : vector<1x32x512xf32> to vector<1xf32>
    %44 = vector.shape_cast %43 : vector<1xf32> to vector<1x1x1xf32>
    %45 = vector.extract %44[0, 0, 0] : f32 from vector<1x1x1xf32>
    %46 = vector.shape_cast %38 : vector<32x512xf32> to vector<1x32x512xf32>
    %cst_18 = arith.constant dense<0.000000e+00> : vector<1xf32>
    %47 = vector.multi_reduction <add>, %46, %cst_18 [1, 2] : vector<1x32x512xf32> to vector<1xf32>
    %48 = vector.shape_cast %47 : vector<1xf32> to vector<1x1x1xf32>
    %49 = vector.extract %48[0, 0, 0] : f32 from vector<1x1x1xf32>
    %50 = tpu.iota {dimensions = array<i32: 0>} : vector<8x128xi32>
    %51 = tpu.iota {dimensions = array<i32: 1>} : vector<8x128xi32>
    %c0_i32 = arith.constant 0 : i32
    %52 = vector.broadcast %c0_i32 : i32 to vector<8x128xi32>
    %53 = arith.cmpi eq, %50, %52 : vector<8x128xi32>
    %c0_i32_19 = arith.constant 0 : i32
    %54 = vector.broadcast %c0_i32_19 : i32 to vector<8x128xi32>
    %55 = arith.cmpi eq, %51, %54 : vector<8x128xi32>
    %56 = arith.andi %53, %55 : vector<8x128xi1>
    %cst_20 = arith.constant 0.000000e+00 : f32
    %57 = vector.broadcast %45 : f32 to vector<8x128xf32>
    %58 = vector.broadcast %cst_20 : f32 to vector<8x128xf32>
    %59 = arith.select %56, %57, %58 : vector<8x128xi1>, vector<8x128xf32>
    %c0_i32_21 = arith.constant 0 : i32
    %60 = vector.broadcast %c0_i32_21 : i32 to vector<8x128xi32>
    %61 = arith.cmpi eq, %50, %60 : vector<8x128xi32>
    %c1_i32 = arith.constant 1 : i32
    %62 = vector.broadcast %c1_i32 : i32 to vector<8x128xi32>
    %63 = arith.cmpi eq, %51, %62 : vector<8x128xi32>
    %64 = arith.andi %61, %63 : vector<8x128xi1>
    %65 = vector.broadcast %49 : f32 to vector<8x128xf32>
    %66 = arith.select %64, %65, %59 : vector<8x128xi1>, vector<8x128xf32>
    %c0_22 = arith.constant 0 : index
    %c0_23 = arith.constant 0 : index
    %67 = vector.load %arg6[%c0_22, %c0_23] : memref<8x128xf32, #tpu.memory_space<vmem>>, vector<8x128xf32>
    tpu.vector_store %arg6[%c0_22, %c0_23], %66 {strides = array<i32>} : memref<8x128xf32, #tpu.memory_space<vmem>>, vector<8x128xf32>,
    return
  }
  func.func @transform_0(%arg0: i32) -> (i32, i32, i32) {
    %c0_i32 = arith.constant 0 : i32
    %c0_i32_0 = arith.constant 0 : i32
    %c0_i32_1 = arith.constant 0 : i32
    return %c0_i32, %arg0, %c0_i32_0 : i32, i32, i32
  }
  func.func @transform_1(%arg0: i32) -> (i32, i32, i32) {
    %c0_i32 = arith.constant 0 : i32
    %c0_i32_0 = arith.constant 0 : i32
    %c0_i32_1 = arith.constant 0 : i32
    return %c0_i32, %arg0, %c0_i32_0 : i32, i32, i32
  }
  func.func @transform_2(%arg0: i32) -> (i32, i32) {
    %c0_i32 = arith.constant 0 : i32
    %c0_i32_0 = arith.constant 0 : i32
    return %arg0, %c0_i32 : i32, i32
  }
  func.func @transform_3(%arg0: i32) -> (i32, i32) {
    %c0_i32 = arith.constant 0 : i32
    %c0_i32_0 = arith.constant 0 : i32
    return %arg0, %c0_i32 : i32, i32
  }
  func.func @transform_4(%arg0: i32) -> (i32, i32) {
    %c0_i32 = arith.constant 0 : i32
    %c0_i32_0 = arith.constant 0 : i32
    return %arg0, %c0_i32 : i32, i32
  }
  func.func @transform_5(%arg0: i32) -> (i32, i32) {
    %c0_i32 = arith.constant 0 : i32
    %c0_i32_0 = arith.constant 0 : i32
    return %arg0, %c0_i32 : i32, i32
  }
}

</mosaic_0001>

<llo_original>
// kernel: ray_completion_loss.1
$region0: #{ray_completion_loss.1}
  #allocation0 [shape = 'u32[]', space=smem, size = 0x4, offset = 0x4, fixed_abs, tag = 'smem constant byte address 0x4 - core index']
  #allocation1 [shape = 'u32[144,128]{1,0:T(1,128)}', space=vmem, size = 0x12000, scoped, tag = 'internal scratch']
  %s0 = inlined_call_operand.vmem [shape: f32[3,32,512], index: 0, kind: input, shape index: {}]
  %s1 = inlined_call_operand.vmem [shape: f32[3,32,512], index: 1, kind: input, shape index: {}]
  %s2 = inlined_call_operand.vmem [shape: f32[32,512], index: 2, kind: input, shape index: {}]
  %s3 = inlined_call_operand.vmem [shape: s8[32,512], index: 3, kind: input, shape index: {}]
  %s4 = inlined_call_operand.vmem [shape: f32[32,512], index: 4, kind: output, shape index: {0}]
  %s5 = inlined_call_operand.vmem [shape: f32[8,128], index: 5, kind: output, shape index: {1}]
  %6 = xla_tuple %s4, %s5
  %s7 = sld [smem:[#allocation0]]
  $region34: #{ray_completion_loss.1} parent=0
    _
  %s9 = ssub.s32 1, %s7
  %s10 = scalar_select 0, %s9, %s7
  // Predicated region
  $region2: #{ray_completion_loss.1} parent=0 // pred_check
    _
  $region3: #{ray_completion_loss.1} parent=0 // pred_check_branch
    %12 = sbr.rel (0) target = $region5
  $region4: #{ray_completion_loss.1} parent=0 // pred_region
    _
  $region5: #{ray_completion_loss.1} parent=0 // pred_fallthru
    _
  // Predicated region
  $region6: #{ray_completion_loss.1} parent=0 // pred_check
    _
  $region7: #{ray_completion_loss.1} parent=0 // pred_check_branch
    %14 = sbr.rel (0) target = $region9
  $region8: #{ray_completion_loss.1} parent=0 // pred_region
    _
  $region9: #{ray_completion_loss.1} parent=0 // pred_fallthru
    _
  // Predicated region
  $region10: #{ray_completion_loss.1} parent=0 // pred_check
    _
  $region11: #{ray_completion_loss.1} parent=0 // pred_check_branch
    %16 = sbr.rel (0) target = $region13
  $region12: #{ray_completion_loss.1} parent=0 // pred_region
    _
  $region13: #{ray_completion_loss.1} parent=0 // pred_fallthru
    _
  // Predicated region
  $region14: #{ray_completion_loss.1} parent=0 // pred_check
    _
  $region15: #{ray_completion_loss.1} parent=0 // pred_check_branch
    %18 = sbr.rel (0) target = $region17
  $region16: #{ray_completion_loss.1} parent=0 // pred_region
    _
  $region17: #{ray_completion_loss.1} parent=0 // pred_fallthru
    _
  %v21 = vld [vmem:[%s0] sm:$0xff]
  %v22 = vld [vmem:[%s0 + $0x8] sm:$0xff]
  %v23 = vld [vmem:[%s0 + $0x10] sm:$0xff]
  %v24 = vld [vmem:[%s0 + $0x18] sm:$0xff]
  %v25 = vld [vmem:[%s0 + $0x20] sm:$0xff]
  %v26 = vld [vmem:[%s0 + $0x28] sm:$0xff]
  %v27 = vld [vmem:[%s0 + $0x30] sm:$0xff]
  %v28 = vld [vmem:[%s0 + $0x38] sm:$0xff]
  %v29 = vld [vmem:[%s0 + $0x40] sm:$0xff]
  %v30 = vld [vmem:[%s0 + $0x48] sm:$0xff]
  %v31 = vld [vmem:[%s0 + $0x50] sm:$0xff]
  %v32 = vld [vmem:[%s0 + $0x58] sm:$0xff]
  %v33 = vld [vmem:[%s0 + $0x60] sm:$0xff]
  %v34 = vld [vmem:[%s0 + $0x68] sm:$0xff]
  %v35 = vld [vmem:[%s0 + $0x70] sm:$0xff]
  %v36 = vld [vmem:[%s0 + $0x78] sm:$0xff]
  %v37 = vld [vmem:[%s0 + $0x80] sm:$0xff]
  %v38 = vld [vmem:[%s0 + $0x88] sm:$0xff]
  %v39 = vld [vmem:[%s0 + $0x90] sm:$0xff]
  %v40 = vld [vmem:[%s0 + $0x98] sm:$0xff]
  %v41 = vld [vmem:[%s0 + $0xa0] sm:$0xff]
  %v42 = vld [vmem:[%s0 + $0xa8] sm:$0xff]
  %v43 = vld [vmem:[%s0 + $0xb0] sm:$0xff]
  %v44 = vld [vmem:[%s0 + $0xb8] sm:$0xff]
  %v45 = vld [vmem:[%s0 + $0xc0] sm:$0xff]
  %v46 = vld [vmem:[%s0 + $0xc8] sm:$0xff]
  %v47 = vld [vmem:[%s0 + $0xd0] sm:$0xff]
  %v48 = vld [vmem:[%s0 + $0xd8] sm:$0xff]
  %v49 = vld [vmem:[%s0 + $0xe0] sm:$0xff]
  %v50 = vld [vmem:[%s0 + $0xe8] sm:$0xff]
  %v51 = vld [vmem:[%s0 + $0xf0] sm:$0xff]
  %v52 = vld [vmem:[%s0 + $0xf8] sm:$0xff]
  %v53 = vld [vmem:[%s0 + $0x100] sm:$0xff]
  %v54 = vld [vmem:[%s0 + $0x108] sm:$0xff]
  %v55 = vld [vmem:[%s0 + $0x110] sm:$0xff]
  %v56 = vld [vmem:[%s0 + $0x118] sm:$0xff]
  %v57 = vld [vmem:[%s0 + $0x120] sm:$0xff]
  %v58 = vld [vmem:[%s0 + $0x128] sm:$0xff]
  %v59 = vld [vmem:[%s0 + $0x130] sm:$0xff]
  %v60 = vld [vmem:[%s0 + $0x138] sm:$0xff]
  %v61 = vld [vmem:[%s0 + $0x140] sm:$0xff]
  %v62 = vld [vmem:[%s0 + $0x148] sm:$0xff]
  %v63 = vld [vmem:[%s0 + $0x150] sm:$0xff]
  %v64 = vld [vmem:[%s0 + $0x158] sm:$0xff]
  %v65 = vld [vmem:[%s0 + $0x160] sm:$0xff]
  %v66 = vld [vmem:[%s0 + $0x168] sm:$0xff]
  %v67 = vld [vmem:[%s0 + $0x170] sm:$0xff]
  %v68 = vld [vmem:[%s0 + $0x178] sm:$0xff]
  %v69 = vld [vmem:[%s1] sm:$0xff]
  %v70 = vld [vmem:[%s1 + $0x8] sm:$0xff]
  %v71 = vld [vmem:[%s1 + $0x10] sm:$0xff]
  %v72 = vld [vmem:[%s1 + $0x18] sm:$0xff]
  %v73 = vld [vmem:[%s1 + $0x20] sm:$0xff]
  %v74 = vld [vmem:[%s1 + $0x28] sm:$0xff]
  %v75 = vld [vmem:[%s1 + $0x30] sm:$0xff]
  %v76 = vld [vmem:[%s1 + $0x38] sm:$0xff]
  %v77 = vld [vmem:[%s1 + $0x40] sm:$0xff]
  %v78 = vld [vmem:[%s1 + $0x48] sm:$0xff]
  %v79 = vld [vmem:[%s1 + $0x50] sm:$0xff]
  %v80 = vld [vmem:[%s1 + $0x58] sm:$0xff]
  %v81 = vld [vmem:[%s1 + $0x60] sm:$0xff]
  %v82 = vld [vmem:[%s1 + $0x68] sm:$0xff]
  %v83 = vld [vmem:[%s1 + $0x70] sm:$0xff]
  %v84 = vld [vmem:[%s1 + $0x78] sm:$0xff]
  %v85 = vld [vmem:[%s1 + $0x80] sm:$0xff]
  %v86 = vld [vmem:[%s1 + $0x88] sm:$0xff]
  %v87 = vld [vmem:[%s1 + $0x90] sm:$0xff]
  %v88 = vld [vmem:[%s1 + $0x98] sm:$0xff]
  %v89 = vld [vmem:[%s1 + $0xa0] sm:$0xff]
  %v90 = vld [vmem:[%s1 + $0xa8] sm:$0xff]
  %v91 = vld [vmem:[%s1 + $0xb0] sm:$0xff]
  %v92 = vld [vmem:[%s1 + $0xb8] sm:$0xff]
  %v93 = vld [vmem:[%s1 + $0xc0] sm:$0xff]
  %v94 = vld [vmem:[%s1 + $0xc8] sm:$0xff]
  %v95 = vld [vmem:[%s1 + $0xd0] sm:$0xff]
  %v96 = vld [vmem:[%s1 + $0xd8] sm:$0xff]
  %v97 = vld [vmem:[%s1 + $0xe0] sm:$0xff]
  %v98 = vld [vmem:[%s1 + $0xe8] sm:$0xff]
  %v99 = vld [vmem:[%s1 + $0xf0] sm:$0xff]
  %v100 = vld [vmem:[%s1 + $0xf8] sm:$0xff]
  %v101 = vld [vmem:[%s1 + $0x100] sm:$0xff]
  %v102 = vld [vmem:[%s1 + $0x108] sm:$0xff]
  %v103 = vld [vmem:[%s1 + $0x110] sm:$0xff]
  %v104 = vld [vmem:[%s1 + $0x118] sm:$0xff]
  %v105 = vld [vmem:[%s1 + $0x120] sm:$0xff]
  %v106 = vld [vmem:[%s1 + $0x128] sm:$0xff]
  %v107 = vld [vmem:[%s1 + $0x130] sm:$0xff]
  %v108 = vld [vmem:[%s1 + $0x138] sm:$0xff]
  %v109 = vld [vmem:[%s1 + $0x140] sm:$0xff]
  %v110 = vld [vmem:[%s1 + $0x148] sm:$0xff]
  %v111 = vld [vmem:[%s1 + $0x150] sm:$0xff]
  %v112 = vld [vmem:[%s1 + $0x158] sm:$0xff]
  %v113 = vld [vmem:[%s1 + $0x160] sm:$0xff]
  %v114 = vld [vmem:[%s1 + $0x168] sm:$0xff]
  %v115 = vld [vmem:[%s1 + $0x170] sm:$0xff]
  %v116 = vld [vmem:[%s1 + $0x178] sm:$0xff]
  %v117 = vmul.f32 %v21, %v21
  %v118 = vmul.f32 %v22, %v22
  %v119 = vmul.f32 %v23, %v23
  %v120 = vmul.f32 %v24, %v24
  %v121 = vmul.f32 %v25, %v25
  %v122 = vmul.f32 %v26, %v26
  %v123 = vmul.f32 %v27, %v27
  %v124 = vmul.f32 %v28, %v28
  %v125 = vmul.f32 %v29, %v29
  %v126 = vmul.f32 %v30, %v30
  %v127 = vmul.f32 %v31, %v31
  %v128 = vmul.f32 %v32, %v32
  %v129 = vmul.f32 %v33, %v33
  %v130 = vmul.f32 %v34, %v34
  %v131 = vmul.f32 %v35, %v35
  %v132 = vmul.f32 %v36, %v36
  %v133 = vmul.f32 %v37, %v37
  %v134 = vmul.f32 %v38, %v38
  %v135 = vmul.f32 %v39, %v39
  %v136 = vmul.f32 %v40, %v40
  %v137 = vmul.f32 %v41, %v41
  %v138 = vmul.f32 %v42, %v42
  %v139 = vmul.f32 %v43, %v43
  %v140 = vmul.f32 %v44, %v44
  %v141 = vmul.f32 %v45, %v45
  %v142 = vmul.f32 %v46, %v46
  %v143 = vmul.f32 %v47, %v47
  %v144 = vmul.f32 %v48, %v48
  %v145 = vmul.f32 %v49, %v49
  %v146 = vmul.f32 %v50, %v50
  %v147 = vmul.f32 %v51, %v51
  %v148 = vmul.f32 %v52, %v52
  %v149 = vmul.f32 %v53, %v53
  %v150 = vmul.f32 %v54, %v54
  %v151 = vmul.f32 %v55, %v55
  %v152 = vmul.f32 %v56, %v56
  %v153 = vmul.f32 %v57, %v57
  %v154 = vmul.f32 %v58, %v58
  %v155 = vmul.f32 %v59, %v59
  %v156 = vmul.f32 %v60, %v60
  %v157 = vmul.f32 %v61, %v61
  %v158 = vmul.f32 %v62, %v62
  %v159 = vmul.f32 %v63, %v63
  %v160 = vmul.f32 %v64, %v64
  %v161 = vmul.f32 %v65, %v65
  %v162 = vmul.f32 %v66, %v66
  %v163 = vmul.f32 %v67, %v67
  %v164 = vmul.f32 %v68, %v68
  %v165 = vadd.f32 %v117, %v133
  %v166 = vadd.f32 %v165, %v149
  %v167 = vadd.f32 %v118, %v134
  %v168 = vadd.f32 %v167, %v150
  %v169 = vadd.f32 %v119, %v135
  %v170 = vadd.f32 %v169, %v151
  %v171 = vadd.f32 %v120, %v136
  %v172 = vadd.f32 %v171, %v152
  %v173 = vadd.f32 %v121, %v137
  %v174 = vadd.f32 %v173, %v153
  %v175 = vadd.f32 %v122, %v138
  %v176 = vadd.f32 %v175, %v154
  %v177 = vadd.f32 %v123, %v139
  %v178 = vadd.f32 %v177, %v155
  %v179 = vadd.f32 %v124, %v140
  %v180 = vadd.f32 %v179, %v156
  %v181 = vadd.f32 %v125, %v141
  %v182 = vadd.f32 %v181, %v157
  %v183 = vadd.f32 %v126, %v142
  %v184 = vadd.f32 %v183, %v158
  %v185 = vadd.f32 %v127, %v143
  %v186 = vadd.f32 %v185, %v159
  %v187 = vadd.f32 %v128, %v144
  %v188 = vadd.f32 %v187, %v160
  %v189 = vadd.f32 %v129, %v145
  %v190 = vadd.f32 %v189, %v161
  %v191 = vadd.f32 %v130, %v146
  %v192 = vadd.f32 %v191, %v162
  %v193 = vadd.f32 %v131, %v147
  %v194 = vadd.f32 %v193, %v163
  %v195 = vadd.f32 %v132, %v148
  %v196 = vadd.f32 %v195, %v164
  %v197 = vrsqrt.pop %v166
  %v198 = vmul.f32 %v166, %v197
  %vm199 = vcmp.eq.f32.partialorder %v166, inf
  %v200 = vsel %vm199, %v166, %v198
  %vm201 = vcmp.eq.f32.partialorder %v166, 0.0
  %v202 = vand.u32 %v166, 2147483648
  %v203 = vsel %vm201, %v202, %v200
  %v204 = vrsqrt.pop %v168
  %v205 = vmul.f32 %v168, %v204
  %vm206 = vcmp.eq.f32.partialorder %v168, inf
  %v207 = vsel %vm206, %v168, %v205
  %vm208 = vcmp.eq.f32.partialorder %v168, 0.0
  %v209 = vand.u32 %v168, 2147483648
  %v210 = vsel %vm208, %v209, %v207
  %v211 = vrsqrt.pop %v170
  %v212 = vmul.f32 %v170, %v211
  %vm213 = vcmp.eq.f32.partialorder %v170, inf
  %v214 = vsel %vm213, %v170, %v212
  %vm215 = vcmp.eq.f32.partialorder %v170, 0.0
  %v216 = vand.u32 %v170, 2147483648
  %v217 = vsel %vm215, %v216, %v214
  %v218 = vrsqrt.pop %v172
  %v219 = vmul.f32 %v172, %v218
  %vm220 = vcmp.eq.f32.partialorder %v172, inf
  %v221 = vsel %vm220, %v172, %v219
  %vm222 = vcmp.eq.f32.partialorder %v172, 0.0
  %v223 = vand.u32 %v172, 2147483648
  %v224 = vsel %vm222, %v223, %v221
  %v225 = vrsqrt.pop %v174
  %v226 = vmul.f32 %v174, %v225
  %vm227 = vcmp.eq.f32.partialorder %v174, inf
  %v228 = vsel %vm227, %v174, %v226
  %vm229 = vcmp.eq.f32.partialorder %v174, 0.0
  %v230 = vand.u32 %v174, 2147483648
  %v231 = vsel %vm229, %v230, %v228
  %v232 = vrsqrt.pop %v176
  %v233 = vmul.f32 %v176, %v232
  %vm234 = vcmp.eq.f32.partialorder %v176, inf
  %v235 = vsel %vm234, %v176, %v233
  %vm236 = vcmp.eq.f32.partialorder %v176, 0.0
  %v237 = vand.u32 %v176, 2147483648
  %v238 = vsel %vm236, %v237, %v235
  %v239 = vrsqrt.pop %v178
  %v240 = vmul.f32 %v178, %v239
  %vm241 = vcmp.eq.f32.partialorder %v178, inf
  %v242 = vsel %vm241, %v178, %v240
  %vm243 = vcmp.eq.f32.partialorder %v178, 0.0
  %v244 = vand.u32 %v178, 2147483648
  %v245 = vsel %vm243, %v244, %v242
  %v246 = vrsqrt.pop %v180
  %v247 = vmul.f32 %v180, %v246
  %vm248 = vcmp.eq.f32.partialorder %v180, inf
  %v249 = vsel %vm248, %v180, %v247
  %vm250 = vcmp.eq.f32.partialorder %v180, 0.0
  %v251 = vand.u32 %v180, 2147483648
  %v252 = vsel %vm250, %v251, %v249
  %v253 = vrsqrt.pop %v182
  %v254 = vmul.f32 %v182, %v253
  %vm255 = vcmp.eq.f32.partialorder %v182, inf
  %v256 = vsel %vm255, %v182, %v254
  %vm257 = vcmp.eq.f32.partialorder %v182, 0.0
  %v258 = vand.u32 %v182, 2147483648
  %v259 = vsel %vm257, %v258, %v256
  %v260 = vrsqrt.pop %v184
  %v261 = vmul.f32 %v184, %v260
  %vm262 = vcmp.eq.f32.partialorder %v184, inf
  %v263 = vsel %vm262, %v184, %v261
  %vm264 = vcmp.eq.f32.partialorder %v184, 0.0
  %v265 = vand.u32 %v184, 2147483648
  %v266 = vsel %vm264, %v265, %v263
  %v267 = vrsqrt.pop %v186
  %v268 = vmul.f32 %v186, %v267
  %vm269 = vcmp.eq.f32.partialorder %v186, inf
  %v270 = vsel %vm269, %v186, %v268
  %vm271 = vcmp.eq.f32.partialorder %v186, 0.0
  %v272 = vand.u32 %v186, 2147483648
  %v273 = vsel %vm271, %v272, %v270
  %v274 = vrsqrt.pop %v188
  %v275 = vmul.f32 %v188, %v274
  %vm276 = vcmp.eq.f32.partialorder %v188, inf
  %v277 = vsel %vm276, %v188, %v275
  %vm278 = vcmp.eq.f32.partialorder %v188, 0.0
  %v279 = vand.u32 %v188, 2147483648
  %v280 = vsel %vm278, %v279, %v277
  %v281 = vrsqrt.pop %v190
  %v282 = vmul.f32 %v190, %v281
  %vm283 = vcmp.eq.f32.partialorder %v190, inf
  %v284 = vsel %vm283, %v190, %v282
  %vm285 = vcmp.eq.f32.partialorder %v190, 0.0
  %v286 = vand.u32 %v190, 2147483648
  %v287 = vsel %vm285, %v286, %v284
  %v288 = vrsqrt.pop %v192
  %v289 = vmul.f32 %v192, %v288
  %vm290 = vcmp.eq.f32.partialorder %v192, inf
  %v291 = vsel %vm290, %v192, %v289
  %vm292 = vcmp.eq.f32.partialorder %v192, 0.0
  %v293 = vand.u32 %v192, 2147483648
  %v294 = vsel %vm292, %v293, %v291
  %v295 = vrsqrt.pop %v194
  %v296 = vmul.f32 %v194, %v295
  %vm297 = vcmp.eq.f32.partialorder %v194, inf
  %v298 = vsel %vm297, %v194, %v296
  %vm299 = vcmp.eq.f32.partialorder %v194, 0.0
  %v300 = vand.u32 %v194, 2147483648
  %v301 = vsel %vm299, %v300, %v298
  %v302 = vrsqrt.pop %v196
  %v303 = vmul.f32 %v196, %v302
  %vm304 = vcmp.eq.f32.partialorder %v196, inf
  %v305 = vsel %vm304, %v196, %v303
  %vm306 = vcmp.eq.f32.partialorder %v196, 0.0
  %v307 = vand.u32 %v196, 2147483648
  %v308 = vsel %vm306, %v307, %v305
  %v309 = vmax.f32 %v166, 1e-16
  %v310 = vmax.f32 %v168, 1e-16
  %v311 = vmax.f32 %v170, 1e-16
  %v312 = vmax.f32 %v172, 1e-16
  %v313 = vmax.f32 %v174, 1e-16
  %v314 = vmax.f32 %v176, 1e-16
  %v315 = vmax.f32 %v178, 1e-16
  %v316 = vmax.f32 %v180, 1e-16
  %v317 = vmax.f32 %v182, 1e-16
  %v318 = vmax.f32 %v184, 1e-16
  %v319 = vmax.f32 %v186, 1e-16
  %v320 = vmax.f32 %v188, 1e-16
  %v321 = vmax.f32 %v190, 1e-16
  %v322 = vmax.f32 %v192, 1e-16
  %v323 = vmax.f32 %v194, 1e-16
  %v324 = vmax.f32 %v196, 1e-16
  %v325 = vrsqrt.pop %v309
  %v326 = vrsqrt.pop %v310
  %v327 = vrsqrt.pop %v311
  %v328 = vrsqrt.pop %v312
  %v329 = vrsqrt.pop %v313
  %v330 = vrsqrt.pop %v314
  %v331 = vrsqrt.pop %v315
  %v332 = vrsqrt.pop %v316
  %v333 = vrsqrt.pop %v317
  %v334 = vrsqrt.pop %v318
  %v335 = vrsqrt.pop %v319
  %v336 = vrsqrt.pop %v320
  %v337 = vrsqrt.pop %v321
  %v338 = vrsqrt.pop %v322
  %v339 = vrsqrt.pop %v323
  %v340 = vrsqrt.pop %v324
  %v341 = vadd.f32 %v203, 1.0
  %v342 = vlog2.pop %v341
  %v343 = vmul.f32 %v342, 0.6931472
  %v344 = vmul.f32 -0.5, %v203
  %v345 = vadd.f32 %v344, 1.0
  %v346 = vmul.f32 %v345, %v203
  %v347 = vand.u32 2147483647, %v203
  %vm348 = vcmp.lt.f32.partialorder %v347, 0.0004427343
  %v349 = vsel %vm348, %v346, %v343
  %v350 = vadd.f32 %v210, 1.0
  %v351 = vlog2.pop %v350
  %v352 = vmul.f32 %v351, 0.6931472
  %v353 = vmul.f32 -0.5, %v210
  %v354 = vadd.f32 %v353, 1.0
  %v355 = vmul.f32 %v354, %v210
  %v356 = vand.u32 2147483647, %v210
  %vm357 = vcmp.lt.f32.partialorder %v356, 0.0004427343
  %v358 = vsel %vm357, %v355, %v352
  %v359 = vadd.f32 %v217, 1.0
  %v360 = vlog2.pop %v359
  %v361 = vmul.f32 %v360, 0.6931472
  %v362 = vmul.f32 -0.5, %v217
  %v363 = vadd.f32 %v362, 1.0
  %v364 = vmul.f32 %v363, %v217
  %v365 = vand.u32 2147483647, %v217
  %vm366 = vcmp.lt.f32.partialorder %v365, 0.0004427343
  %v367 = vsel %vm366, %v364, %v361
  %v368 = vadd.f32 %v224, 1.0
  %v369 = vlog2.pop %v368
  %v370 = vmul.f32 %v369, 0.6931472
  %v371 = vmul.f32 -0.5, %v224
  %v372 = vadd.f32 %v371, 1.0
  %v373 = vmul.f32 %v372, %v224
  %v374 = vand.u32 2147483647, %v224
  %vm375 = vcmp.lt.f32.partialorder %v374, 0.0004427343
  %v376 = vsel %vm375, %v373, %v370
  %v377 = vadd.f32 %v231, 1.0
  %v378 = vlog2.pop %v377
  %v379 = vmul.f32 %v378, 0.6931472
  %v380 = vmul.f32 -0.5, %v231
  %v381 = vadd.f32 %v380, 1.0
  %v382 = vmul.f32 %v381, %v231
  %v383 = vand.u32 2147483647, %v231
  %vm384 = vcmp.lt.f32.partialorder %v383, 0.0004427343
  %v385 = vsel %vm384, %v382, %v379
  %v386 = vadd.f32 %v238, 1.0
  %v387 = vlog2.pop %v386
  %v388 = vmul.f32 %v387, 0.6931472
  %v389 = vmul.f32 -0.5, %v238
  %v390 = vadd.f32 %v389, 1.0
  %v391 = vmul.f32 %v390, %v238
  %v392 = vand.u32 2147483647, %v238
  %vm393 = vcmp.lt.f32.partialorder %v392, 0.0004427343
  %v394 = vsel %vm393, %v391, %v388
  %v395 = vadd.f32 %v245, 1.0
  %v396 = vlog2.pop %v395
  %v397 = vmul.f32 %v396, 0.6931472
  %v398 = vmul.f32 -0.5, %v245
  %v399 = vadd.f32 %v398, 1.0
  %v400 = vmul.f32 %v399, %v245
  %v401 = vand.u32 2147483647, %v245
  %vm402 = vcmp.lt.f32.partialorder %v401, 0.0004427343
  %v403 = vsel %vm402, %v400, %v397
  %v404 = vadd.f32 %v252, 1.0
  %v405 = vlog2.pop %v404
  %v406 = vmul.f32 %v405, 0.6931472
  %v407 = vmul.f32 -0.5, %v252
  %v408 = vadd.f32 %v407, 1.0
  %v409 = vmul.f32 %v408, %v252
  %v410 = vand.u32 2147483647, %v252
  %vm411 = vcmp.lt.f32.partialorder %v410, 0.0004427343
  %v412 = vsel %vm411, %v409, %v406
  %v413 = vadd.f32 %v259, 1.0
  %v414 = vlog2.pop %v413
  %v415 = vmul.f32 %v414, 0.6931472
  %v416 = vmul.f32 -0.5, %v259
  %v417 = vadd.f32 %v416, 1.0
  %v418 = vmul.f32 %v417, %v259
  %v419 = vand.u32 2147483647, %v259
  %vm420 = vcmp.lt.f32.partialorder %v419, 0.0004427343
  %v421 = vsel %vm420, %v418, %v415
  %v422 = vadd.f32 %v266, 1.0
  %v423 = vlog2.pop %v422
  %v424 = vmul.f32 %v423, 0.6931472
  %v425 = vmul.f32 -0.5, %v266
  %v426 = vadd.f32 %v425, 1.0
  %v427 = vmul.f32 %v426, %v266
  %v428 = vand.u32 2147483647, %v266
  %vm429 = vcmp.lt.f32.partialorder %v428, 0.0004427343
  %v430 = vsel %vm429, %v427, %v424
  %v431 = vadd.f32 %v273, 1.0
  %v432 = vlog2.pop %v431
  %v433 = vmul.f32 %v432, 0.6931472
  %v434 = vmul.f32 -0.5, %v273
  %v435 = vadd.f32 %v434, 1.0
  %v436 = vmul.f32 %v435, %v273
  %v437 = vand.u32 2147483647, %v273
  %vm438 = vcmp.lt.f32.partialorder %v437, 0.0004427343
  %v439 = vsel %vm438, %v436, %v433
  %v440 = vadd.f32 %v280, 1.0
  %v441 = vlog2.pop %v440
  %v442 = vmul.f32 %v441, 0.6931472
  %v443 = vmul.f32 -0.5, %v280
  %v444 = vadd.f32 %v443, 1.0
  %v445 = vmul.f32 %v444, %v280
  %v446 = vand.u32 2147483647, %v280
  %vm447 = vcmp.lt.f32.partialorder %v446, 0.0004427343
  %v448 = vsel %vm447, %v445, %v442
  %v449 = vadd.f32 %v287, 1.0
  %v450 = vlog2.pop %v449
  %v451 = vmul.f32 %v450, 0.6931472
  %v452 = vmul.f32 -0.5, %v287
  %v453 = vadd.f32 %v452, 1.0
  %v454 = vmul.f32 %v453, %v287
  %v455 = vand.u32 2147483647, %v287
  %vm456 = vcmp.lt.f32.partialorder %v455, 0.0004427343
  %v457 = vsel %vm456, %v454, %v451
  %v458 = vadd.f32 %v294, 1.0
  %v459 = vlog2.pop %v458
  %v460 = vmul.f32 %v459, 0.6931472
  %v461 = vmul.f32 -0.5, %v294
  %v462 = vadd.f32 %v461, 1.0
  %v463 = vmul.f32 %v462, %v294
  %v464 = vand.u32 2147483647, %v294
  %vm465 = vcmp.lt.f32.partialorder %v464, 0.0004427343
  %v466 = vsel %vm465, %v463, %v460
  %v467 = vadd.f32 %v301, 1.0
  %v468 = vlog2.pop %v467
  %v469 = vmul.f32 %v468, 0.6931472
  %v470 = vmul.f32 -0.5, %v301
  %v471 = vadd.f32 %v470, 1.0
  %v472 = vmul.f32 %v471, %v301
  %v473 = vand.u32 2147483647, %v301
  %vm474 = vcmp.lt.f32.partialorder %v473, 0.0004427343
  %v475 = vsel %vm474, %v472, %v469
  %v476 = vadd.f32 %v308, 1.0
  %v477 = vlog2.pop %v476
  %v478 = vmul.f32 %v477, 0.6931472
  %v479 = vmul.f32 -0.5, %v308
  %v480 = vadd.f32 %v479, 1.0
  %v481 = vmul.f32 %v480, %v308
  %v482 = vand.u32 2147483647, %v308
  %vm483 = vcmp.lt.f32.partialorder %v482, 0.0004427343
  %v484 = vsel %vm483, %v481, %v478
  %v485 = vmul.f32 %v325, %v349
  %v486 = vmul.f32 %v326, %v358
  %v487 = vmul.f32 %v327, %v367
  %v488 = vmul.f32 %v328, %v376
  %v489 = vmul.f32 %v329, %v385
  %v490 = vmul.f32 %v330, %v394
  %v491 = vmul.f32 %v331, %v403
  %v492 = vmul.f32 %v332, %v412
  %v493 = vmul.f32 %v333, %v421
  %v494 = vmul.f32 %v334, %v430
  %v495 = vmul.f32 %v335, %v439
  %v496 = vmul.f32 %v336, %v448
  %v497 = vmul.f32 %v337, %v457
  %v498 = vmul.f32 %v338, %v466
  %v499 = vmul.f32 %v339, %v475
  %v500 = vmul.f32 %v340, %v484
  %v501 = vmul.f32 %v21, %v485
  %v502 = vmul.f32 %v22, %v486
  %v503 = vmul.f32 %v23, %v487
  %v504 = vmul.f32 %v24, %v488
  %v505 = vmul.f32 %v25, %v489
  %v506 = vmul.f32 %v26, %v490
  %v507 = vmul.f32 %v27, %v491
  %v508 = vmul.f32 %v28, %v492
  %v509 = vmul.f32 %v29, %v493
  %v510 = vmul.f32 %v30, %v494
  %v511 = vmul.f32 %v31, %v495
  %v512 = vmul.f32 %v32, %v496
  %v513 = vmul.f32 %v33, %v497
  %v514 = vmul.f32 %v34, %v498
  %v515 = vmul.f32 %v35, %v499
  %v516 = vmul.f32 %v36, %v500
  %v517 = vmul.f32 %v37, %v485
  %v518 = vmul.f32 %v38, %v486
  %v519 = vmul.f32 %v39, %v487
  %v520 = vmul.f32 %v40, %v488
  %v521 = vmul.f32 %v41, %v489
  %v522 = vmul.f32 %v42, %v490
  %v523 = vmul.f32 %v43, %v491
  %v524 = vmul.f32 %v44, %v492
  %v525 = vmul.f32 %v45, %v493
  %v526 = vmul.f32 %v46, %v494
  %v527 = vmul.f32 %v47, %v495
  %v528 = vmul.f32 %v48, %v496
  %v529 = vmul.f32 %v49, %v497
  %v530 = vmul.f32 %v50, %v498
  %v531 = vmul.f32 %v51, %v499
  %v532 = vmul.f32 %v52, %v500
  %v533 = vmul.f32 %v53, %v485
  %v534 = vmul.f32 %v54, %v486
  %v535 = vmul.f32 %v55, %v487
  %v536 = vmul.f32 %v56, %v488
  %v537 = vmul.f32 %v57, %v489
  %v538 = vmul.f32 %v58, %v490
  %v539 = vmul.f32 %v59, %v491
  %v540 = vmul.f32 %v60, %v492
  %v541 = vmul.f32 %v61, %v493
  %v542 = vmul.f32 %v62, %v494
  %v543 = vmul.f32 %v63, %v495
  %v544 = vmul.f32 %v64, %v496
  %v545 = vmul.f32 %v65, %v497
  %v546 = vmul.f32 %v66, %v498
  %v547 = vmul.f32 %v67, %v499
  %v548 = vmul.f32 %v68, %v500
  %v549 = vmul.f32 %v69, %v69
  %v550 = vmul.f32 %v70, %v70
  %v551 = vmul.f32 %v71, %v71
  %v552 = vmul.f32 %v72, %v72
  %v553 = vmul.f32 %v73, %v73
  %v554 = vmul.f32 %v74, %v74
  %v555 = vmul.f32 %v75, %v75
  %v556 = vmul.f32 %v76, %v76
  %v557 = vmul.f32 %v77, %v77
  %v558 = vmul.f32 %v78, %v78
  %v559 = vmul.f32 %v79, %v79
  %v560 = vmul.f32 %v80, %v80
  %v561 = vmul.f32 %v81, %v81
  %v562 = vmul.f32 %v82, %v82
  %v563 = vmul.f32 %v83, %v83
  %v564 = vmul.f32 %v84, %v84
  %v565 = vmul.f32 %v85, %v85
  %v566 = vmul.f32 %v86, %v86
  %v567 = vmul.f32 %v87, %v87
  %v568 = vmul.f32 %v88, %v88
  %v569 = vmul.f32 %v89, %v89
  %v570 = vmul.f32 %v90, %v90
  %v571 = vmul.f32 %v91, %v91
  %v572 = vmul.f32 %v92, %v92
  %v573 = vmul.f32 %v93, %v93
  %v574 = vmul.f32 %v94, %v94
  %v575 = vmul.f32 %v95, %v95
  %v576 = vmul.f32 %v96, %v96
  %v577 = vmul.f32 %v97, %v97
  %v578 = vmul.f32 %v98, %v98
  %v579 = vmul.f32 %v99, %v99
  %v580 = vmul.f32 %v100, %v100
  %v581 = vmul.f32 %v101, %v101
  %v582 = vmul.f32 %v102, %v102
  %v583 = vmul.f32 %v103, %v103
  %v584 = vmul.f32 %v104, %v104
  %v585 = vmul.f32 %v105, %v105
  %v586 = vmul.f32 %v106, %v106
  %v587 = vmul.f32 %v107, %v107
  %v588 = vmul.f32 %v108, %v108
  %v589 = vmul.f32 %v109, %v109
  %v590 = vmul.f32 %v110, %v110
  %v591 = vmul.f32 %v111, %v111
  %v592 = vmul.f32 %v112, %v112
  %v593 = vmul.f32 %v113, %v113
  %v594 = vmul.f32 %v114, %v114
  %v595 = vmul.f32 %v115, %v115
  %v596 = vmul.f32 %v116, %v116
  %v597 = vadd.f32 %v549, %v565
  %v598 = vadd.f32 %v597, %v581
  %v599 = vadd.f32 %v550, %v566
  %v600 = vadd.f32 %v599, %v582
  %v601 = vadd.f32 %v551, %v567
  %v602 = vadd.f32 %v601, %v583
  %v603 = vadd.f32 %v552, %v568
  %v604 = vadd.f32 %v603, %v584
  %v605 = vadd.f32 %v553, %v569
  %v606 = vadd.f32 %v605, %v585
  %v607 = vadd.f32 %v554, %v570
  %v608 = vadd.f32 %v607, %v586
  %v609 = vadd.f32 %v555, %v571
  %v610 = vadd.f32 %v609, %v587
  %v611 = vadd.f32 %v556, %v572
  %v612 = vadd.f32 %v611, %v588
  %v613 = vadd.f32 %v557, %v573
  %v614 = vadd.f32 %v613, %v589
  %v615 = vadd.f32 %v558, %v574
  %v616 = vadd.f32 %v615, %v590
  %v617 = vadd.f32 %v559, %v575
  %v618 = vadd.f32 %v617, %v591
  %v619 = vadd.f32 %v560, %v576
  %v620 = vadd.f32 %v619, %v592
  %v621 = vadd.f32 %v561, %v577
  %v622 = vadd.f32 %v621, %v593
  %v623 = vadd.f32 %v562, %v578
  %v624 = vadd.f32 %v623, %v594
  %v625 = vadd.f32 %v563, %v579
  %v626 = vadd.f32 %v625, %v595
  %v627 = vadd.f32 %v564, %v580
  %v628 = vadd.f32 %v627, %v596
  %v629 = vrsqrt.pop %v598
  %v630 = vmul.f32 %v598, %v629
  %vm631 = vcmp.eq.f32.partialorder %v598, inf
  %v632 = vsel %vm631, %v598, %v630
  %vm633 = vcmp.eq.f32.partialorder %v598, 0.0
  %v634 = vand.u32 %v598, 2147483648
  %v635 = vsel %vm633, %v634, %v632
  %v636 = vrsqrt.pop %v600
  %v637 = vmul.f32 %v600, %v636
  %vm638 = vcmp.eq.f32.partialorder %v600, inf
  %v639 = vsel %vm638, %v600, %v637
  %vm640 = vcmp.eq.f32.partialorder %v600, 0.0
  %v641 = vand.u32 %v600, 2147483648
  %v642 = vsel %vm640, %v641, %v639
  %v643 = vrsqrt.pop %v602
  %v644 = vmul.f32 %v602, %v643
  %vm645 = vcmp.eq.f32.partialorder %v602, inf
  %v646 = vsel %vm645, %v602, %v644
  %vm647 = vcmp.eq.f32.partialorder %v602, 0.0
  %v648 = vand.u32 %v602, 2147483648
  %v649 = vsel %vm647, %v648, %v646
  %v650 = vrsqrt.pop %v604
  %v651 = vmul.f32 %v604, %v650
  %vm652 = vcmp.eq.f32.partialorder %v604, inf
  %v653 = vsel %vm652, %v604, %v651
  %vm654 = vcmp.eq.f32.partialorder %v604, 0.0
  %v655 = vand.u32 %v604, 2147483648
  %v656 = vsel %vm654, %v655, %v653
  %v657 = vrsqrt.pop %v606
  %v658 = vmul.f32 %v606, %v657
  %vm659 = vcmp.eq.f32.partialorder %v606, inf
  %v660 = vsel %vm659, %v606, %v658
  %vm661 = vcmp.eq.f32.partialorder %v606, 0.0
  %v662 = vand.u32 %v606, 2147483648
  %v663 = vsel %vm661, %v662, %v660
  %v664 = vrsqrt.pop %v608
  %v665 = vmul.f32 %v608, %v664
  %vm666 = vcmp.eq.f32.partialorder %v608, inf
  %v667 = vsel %vm666, %v608, %v665
  %vm668 = vcmp.eq.f32.partialorder %v608, 0.0
  %v669 = vand.u32 %v608, 2147483648
  %v670 = vsel %vm668, %v669, %v667
  %v671 = vrsqrt.pop %v610
  %v672 = vmul.f32 %v610, %v671
  %vm673 = vcmp.eq.f32.partialorder %v610, inf
  %v674 = vsel %vm673, %v610, %v672
  %vm675 = vcmp.eq.f32.partialorder %v610, 0.0
  %v676 = vand.u32 %v610, 2147483648
  %v677 = vsel %vm675, %v676, %v674
  %v678 = vrsqrt.pop %v612
  %v679 = vmul.f32 %v612, %v678
  %vm680 = vcmp.eq.f32.partialorder %v612, inf
  %v681 = vsel %vm680, %v612, %v679
  %vm682 = vcmp.eq.f32.partialorder %v612, 0.0
  %v683 = vand.u32 %v612, 2147483648
  %v684 = vsel %vm682, %v683, %v681
  %v685 = vrsqrt.pop %v614
  %v686 = vmul.f32 %v614, %v685
  %vm687 = vcmp.eq.f32.partialorder %v614, inf
  %v688 = vsel %vm687, %v614, %v686
  %vm689 = vcmp.eq.f32.partialorder %v614, 0.0
  %v690 = vand.u32 %v614, 2147483648
  %v691 = vsel %vm689, %v690, %v688
  %v692 = vrsqrt.pop %v616
  %v693 = vmul.f32 %v616, %v692
  %vm694 = vcmp.eq.f32.partialorder %v616, inf
  %v695 = vsel %vm694, %v616, %v693
  %vm696 = vcmp.eq.f32.partialorder %v616, 0.0
  %v697 = vand.u32 %v616, 2147483648
  %v698 = vsel %vm696, %v697, %v695
  %v699 = vrsqrt.pop %v618
  %v700 = vmul.f32 %v618, %v699
  %vm701 = vcmp.eq.f32.partialorder %v618, inf
  %v702 = vsel %vm701, %v618, %v700
  %vm703 = vcmp.eq.f32.partialorder %v618, 0.0
  %v704 = vand.u32 %v618, 2147483648
  %v705 = vsel %vm703, %v704, %v702
  %v706 = vrsqrt.pop %v620
  %v707 = vmul.f32 %v620, %v706
  %vm708 = vcmp.eq.f32.partialorder %v620, inf
  %v709 = vsel %vm708, %v620, %v707
  %vm710 = vcmp.eq.f32.partialorder %v620, 0.0
  %v711 = vand.u32 %v620, 2147483648
  %v712 = vsel %vm710, %v711, %v709
  %v713 = vrsqrt.pop %v622
  %v714 = vmul.f32 %v622, %v713
  %vm715 = vcmp.eq.f32.partialorder %v622, inf
  %v716 = vsel %vm715, %v622, %v714
  %vm717 = vcmp.eq.f32.partialorder %v622, 0.0
  %v718 = vand.u32 %v622, 2147483648
  %v719 = vsel %vm717, %v718, %v716
  %v720 = vrsqrt.pop %v624
  %v721 = vmul.f32 %v624, %v720
  %vm722 = vcmp.eq.f32.partialorder %v624, inf
  %v723 = vsel %vm722, %v624, %v721
  %vm724 = vcmp.eq.f32.partialorder %v624, 0.0
  %v725 = vand.u32 %v624, 2147483648
  %v726 = vsel %vm724, %v725, %v723
  %v727 = vrsqrt.pop %v626
  %v728 = vmul.f32 %v626, %v727
  %vm729 = vcmp.eq.f32.partialorder %v626, inf
  %v730 = vsel %vm729, %v626, %v728
  %vm731 = vcmp.eq.f32.partialorder %v626, 0.0
  %v732 = vand.u32 %v626, 2147483648
  %v733 = vsel %vm731, %v732, %v730
  %v734 = vrsqrt.pop %v628
  %v735 = vmul.f32 %v628, %v734
  %vm736 = vcmp.eq.f32.partialorder %v628, inf
  %v737 = vsel %vm736, %v628, %v735
  %vm738 = vcmp.eq.f32.partialorder %v628, 0.0
  %v739 = vand.u32 %v628, 2147483648
  %v740 = vsel %vm738, %v739, %v737
  %v741 = vmax.f32 %v598, 1e-16
  %v742 = vmax.f32 %v600, 1e-16
  %v743 = vmax.f32 %v602, 1e-16
  %v744 = vmax.f32 %v604, 1e-16
  %v745 = vmax.f32 %v606, 1e-16
  %v746 = vmax.f32 %v608, 1e-16
  %v747 = vmax.f32 %v610, 1e-16
  %v748 = vmax.f32 %v612, 1e-16
  %v749 = vmax.f32 %v614, 1e-16
  %v750 = vmax.f32 %v616, 1e-16
  %v751 = vmax.f32 %v618, 1e-16
  %v752 = vmax.f32 %v620, 1e-16
  %v753 = vmax.f32 %v622, 1e-16
  %v754 = vmax.f32 %v624, 1e-16
  %v755 = vmax.f32 %v626, 1e-16
  %v756 = vmax.f32 %v628, 1e-16
  %v757 = vrsqrt.pop %v741
  %v758 = vrsqrt.pop %v742
  %v759 = vrsqrt.pop %v743
  %v760 = vrsqrt.pop %v744
  %v761 = vrsqrt.pop %v745
  %v762 = vrsqrt.pop %v746
  %v763 = vrsqrt.pop %v747
  %v764 = vrsqrt.pop %v748
  %v765 = vrsqrt.pop %v749
  %v766 = vrsqrt.pop %v750
  %v767 = vrsqrt.pop %v751
  %v768 = vrsqrt.pop %v752
  %v769 = vrsqrt.pop %v753
  %v770 = vrsqrt.pop %v754
  %v771 = vrsqrt.pop %v755
  %v772 = vrsqrt.pop %v756
  %v773 = vadd.f32 %v635, 1.0
  %v774 = vlog2.pop %v773
  %v775 = vmul.f32 %v774, 0.6931472
  %v776 = vmul.f32 -0.5, %v635
  %v777 = vadd.f32 %v776, 1.0
  %v778 = vmul.f32 %v777, %v635
  %v779 = vand.u32 2147483647, %v635
  %vm780 = vcmp.lt.f32.partialorder %v779, 0.0004427343
  %v781 = vsel %vm780, %v778, %v775
  %v782 = vadd.f32 %v642, 1.0
  %v783 = vlog2.pop %v782
  %v784 = vmul.f32 %v783, 0.6931472
  %v785 = vmul.f32 -0.5, %v642
  %v786 = vadd.f32 %v785, 1.0
  %v787 = vmul.f32 %v786, %v642
  %v788 = vand.u32 2147483647, %v642
  %vm789 = vcmp.lt.f32.partialorder %v788, 0.0004427343
  %v790 = vsel %vm789, %v787, %v784
  %v791 = vadd.f32 %v649, 1.0
  %v792 = vlog2.pop %v791
  %v793 = vmul.f32 %v792, 0.6931472
  %v794 = vmul.f32 -0.5, %v649
  %v795 = vadd.f32 %v794, 1.0
  %v796 = vmul.f32 %v795, %v649
  %v797 = vand.u32 2147483647, %v649
  %vm798 = vcmp.lt.f32.partialorder %v797, 0.0004427343
  %v799 = vsel %vm798, %v796, %v793
  %v800 = vadd.f32 %v656, 1.0
  %v801 = vlog2.pop %v800
  %v802 = vmul.f32 %v801, 0.6931472
  %v803 = vmul.f32 -0.5, %v656
  %v804 = vadd.f32 %v803, 1.0
  %v805 = vmul.f32 %v804, %v656
  %v806 = vand.u32 2147483647, %v656
  %vm807 = vcmp.lt.f32.partialorder %v806, 0.0004427343
  %v808 = vsel %vm807, %v805, %v802
  %v809 = vadd.f32 %v663, 1.0
  %v810 = vlog2.pop %v809
  %v811 = vmul.f32 %v810, 0.6931472
  %v812 = vmul.f32 -0.5, %v663
  %v813 = vadd.f32 %v812, 1.0
  %v814 = vmul.f32 %v813, %v663
  %v815 = vand.u32 2147483647, %v663
  %vm816 = vcmp.lt.f32.partialorder %v815, 0.0004427343
  %v817 = vsel %vm816, %v814, %v811
  %v818 = vadd.f32 %v670, 1.0
  %v819 = vlog2.pop %v818
  %v820 = vmul.f32 %v819, 0.6931472
  %v821 = vmul.f32 -0.5, %v670
  %v822 = vadd.f32 %v821, 1.0
  %v823 = vmul.f32 %v822, %v670
  %v824 = vand.u32 2147483647, %v670
  %vm825 = vcmp.lt.f32.partialorder %v824, 0.0004427343
  %v826 = vsel %vm825, %v823, %v820
  %v827 = vadd.f32 %v677, 1.0
  %v828 = vlog2.pop %v827
  %v829 = vmul.f32 %v828, 0.6931472
  %v830 = vmul.f32 -0.5, %v677
  %v831 = vadd.f32 %v830, 1.0
  %v832 = vmul.f32 %v831, %v677
  %v833 = vand.u32 2147483647, %v677
  %vm834 = vcmp.lt.f32.partialorder %v833, 0.0004427343
  %v835 = vsel %vm834, %v832, %v829
  %v836 = vadd.f32 %v684, 1.0
  %v837 = vlog2.pop %v836
  %v838 = vmul.f32 %v837, 0.6931472
  %v839 = vmul.f32 -0.5, %v684
  %v840 = vadd.f32 %v839, 1.0
  %v841 = vmul.f32 %v840, %v684
  %v842 = vand.u32 2147483647, %v684
  %vm843 = vcmp.lt.f32.partialorder %v842, 0.0004427343
  %v844 = vsel %vm843, %v841, %v838
  %v845 = vadd.f32 %v691, 1.0
  %v846 = vlog2.pop %v845
  %v847 = vmul.f32 %v846, 0.6931472
  %v848 = vmul.f32 -0.5, %v691
  %v849 = vadd.f32 %v848, 1.0
  %v850 = vmul.f32 %v849, %v691
  %v851 = vand.u32 2147483647, %v691
  %vm852 = vcmp.lt.f32.partialorder %v851, 0.0004427343
  %v853 = vsel %vm852, %v850, %v847
  %v854 = vadd.f32 %v698, 1.0
  %v855 = vlog2.pop %v854
  %v856 = vmul.f32 %v855, 0.6931472
  %v857 = vmul.f32 -0.5, %v698
  %v858 = vadd.f32 %v857, 1.0
  %v859 = vmul.f32 %v858, %v698
  %v860 = vand.u32 2147483647, %v698
  %vm861 = vcmp.lt.f32.partialorder %v860, 0.0004427343
  %v862 = vsel %vm861, %v859, %v856
  %v863 = vadd.f32 %v705, 1.0
  %v864 = vlog2.pop %v863
  %v865 = vmul.f32 %v864, 0.6931472
  %v866 = vmul.f32 -0.5, %v705
  %v867 = vadd.f32 %v866, 1.0
  %v868 = vmul.f32 %v867, %v705
  %v869 = vand.u32 2147483647, %v705
  %vm870 = vcmp.lt.f32.partialorder %v869, 0.0004427343
  %v871 = vsel %vm870, %v868, %v865
  %v872 = vadd.f32 %v712, 1.0
  %v873 = vlog2.pop %v872
  %v874 = vmul.f32 %v873, 0.6931472
  %v875 = vmul.f32 -0.5, %v712
  %v876 = vadd.f32 %v875, 1.0
  %v877 = vmul.f32 %v876, %v712
  %v878 = vand.u32 2147483647, %v712
  %vm879 = vcmp.lt.f32.partialorder %v878, 0.0004427343
  %v880 = vsel %vm879, %v877, %v874
  %v881 = vadd.f32 %v719, 1.0
  %v882 = vlog2.pop %v881
  %v883 = vmul.f32 %v882, 0.6931472
  %v884 = vmul.f32 -0.5, %v719
  %v885 = vadd.f32 %v884, 1.0
  %v886 = vmul.f32 %v885, %v719
  %v887 = vand.u32 2147483647, %v719
  %vm888 = vcmp.lt.f32.partialorder %v887, 0.0004427343
  %v889 = vsel %vm888, %v886, %v883
  %v890 = vadd.f32 %v726, 1.0
  %v891 = vlog2.pop %v890
  %v892 = vmul.f32 %v891, 0.6931472
  %v893 = vmul.f32 -0.5, %v726
  %v894 = vadd.f32 %v893, 1.0
  %v895 = vmul.f32 %v894, %v726
  %v896 = vand.u32 2147483647, %v726
  %vm897 = vcmp.lt.f32.partialorder %v896, 0.0004427343
  %v898 = vsel %vm897, %v895, %v892
  %v899 = vadd.f32 %v733, 1.0
  %v900 = vlog2.pop %v899
  %v901 = vmul.f32 %v900, 0.6931472
  %v902 = vmul.f32 -0.5, %v733
  %v903 = vadd.f32 %v902, 1.0
  %v904 = vmul.f32 %v903, %v733
  %v905 = vand.u32 2147483647, %v733
  %vm906 = vcmp.lt.f32.partialorder %v905, 0.0004427343
  %v907 = vsel %vm906, %v904, %v901
  %v908 = vadd.f32 %v740, 1.0
  %v909 = vlog2.pop %v908
  %v910 = vmul.f32 %v909, 0.6931472
  %v911 = vmul.f32 -0.5, %v740
  %v912 = vadd.f32 %v911, 1.0
  %v913 = vmul.f32 %v912, %v740
  %v914 = vand.u32 2147483647, %v740
  %vm915 = vcmp.lt.f32.partialorder %v914, 0.0004427343
  %v916 = vsel %vm915, %v913, %v910
  %v917 = vmul.f32 %v757, %v781
  %v918 = vmul.f32 %v758, %v790
  %v919 = vmul.f32 %v759, %v799
  %v920 = vmul.f32 %v760, %v808
  %v921 = vmul.f32 %v761, %v817
  %v922 = vmul.f32 %v762, %v826
  %v923 = vmul.f32 %v763, %v835
  %v924 = vmul.f32 %v764, %v844
  %v925 = vmul.f32 %v765, %v853
  %v926 = vmul.f32 %v766, %v862
  %v927 = vmul.f32 %v767, %v871
  %v928 = vmul.f32 %v768, %v880
  %v929 = vmul.f32 %v769, %v889
  %v930 = vmul.f32 %v770, %v898
  %v931 = vmul.f32 %v771, %v907
  %v932 = vmul.f32 %v772, %v916
  %v933 = vmul.f32 %v69, %v917
  %v934 = vmul.f32 %v70, %v918
  %v935 = vmul.f32 %v71, %v919
  %v936 = vmul.f32 %v72, %v920
  %v937 = vmul.f32 %v73, %v921
  %v938 = vmul.f32 %v74, %v922
  %v939 = vmul.f32 %v75, %v923
  %v940 = vmul.f32 %v76, %v924
  %v941 = vmul.f32 %v77, %v925
  %v942 = vmul.f32 %v78, %v926
  %v943 = vmul.f32 %v79, %v927
  %v944 = vmul.f32 %v80, %v928
  %v945 = vmul.f32 %v81, %v929
  %v946 = vmul.f32 %v82, %v930
  %v947 = vmul.f32 %v83, %v931
  %v948 = vmul.f32 %v84, %v932
  %v949 = vmul.f32 %v85, %v917
  %v950 = vmul.f32 %v86, %v918
  %v951 = vmul.f32 %v87, %v919
  %v952 = vmul.f32 %v88, %v920
  %v953 = vmul.f32 %v89, %v921
  %v954 = vmul.f32 %v90, %v922
  %v955 = vmul.f32 %v91, %v923
  %v956 = vmul.f32 %v92, %v924
  %v957 = vmul.f32 %v93, %v925
  %v958 = vmul.f32 %v94, %v926
  %v959 = vmul.f32 %v95, %v927
  %v960 = vmul.f32 %v96, %v928
  %v961 = vmul.f32 %v97, %v929
  %v962 = vmul.f32 %v98, %v930
  %v963 = vmul.f32 %v99, %v931
  %v964 = vmul.f32 %v100, %v932
  %v965 = vmul.f32 %v101, %v917
  %v966 = vmul.f32 %v102, %v918
  %v967 = vmul.f32 %v103, %v919
  %v968 = vmul.f32 %v104, %v920
  %v969 = vmul.f32 %v105, %v921
  %v970 = vmul.f32 %v106, %v922
  %v971 = vmul.f32 %v107, %v923
  %v972 = vmul.f32 %v108, %v924
  %v973 = vmul.f32 %v109, %v925
  %v974 = vmul.f32 %v110, %v926
  %v975 = vmul.f32 %v111, %v927
  %v976 = vmul.f32 %v112, %v928
  %v977 = vmul.f32 %v113, %v929
  %v978 = vmul.f32 %v114, %v930
  %v979 = vmul.f32 %v115, %v931
  %v980 = vmul.f32 %v116, %v932
  %v981 = vsub.f32 %v501, %v933
  %v982 = vsub.f32 %v502, %v934
  %v983 = vsub.f32 %v503, %v935
  %v984 = vsub.f32 %v504, %v936
  %v985 = vsub.f32 %v505, %v937
  %v986 = vsub.f32 %v506, %v938
  %v987 = vsub.f32 %v507, %v939
  %v988 = vsub.f32 %v508, %v940
  %v989 = vsub.f32 %v509, %v941
  %v990 = vsub.f32 %v510, %v942
  %v991 = vsub.f32 %v511, %v943
  %v992 = vsub.f32 %v512, %v944
  %v993 = vsub.f32 %v513, %v945
  %v994 = vsub.f32 %v514, %v946
  %v995 = vsub.f32 %v515, %v947
  %v996 = vsub.f32 %v516, %v948
  %v997 = vsub.f32 %v517, %v949
  %v998 = vsub.f32 %v518, %v950
  %v999 = vsub.f32 %v519, %v951
  %v1000 = vsub.f32 %v520, %v952
  %v1001 = vsub.f32 %v521, %v953
  %v1002 = vsub.f32 %v522, %v954
  %v1003 = vsub.f32 %v523, %v955
  %v1004 = vsub.f32 %v524, %v956
  %v1005 = vsub.f32 %v525, %v957
  %v1006 = vsub.f32 %v526, %v958
  %v1007 = vsub.f32 %v527, %v959
  %v1008 = vsub.f32 %v528, %v960
  %v1009 = vsub.f32 %v529, %v961
  %v1010 = vsub.f32 %v530, %v962
  %v1011 = vsub.f32 %v531, %v963
  %v1012 = vsub.f32 %v532, %v964
  %v1013 = vsub.f32 %v533, %v965
  %v1014 = vsub.f32 %v534, %v966
  %v1015 = vsub.f32 %v535, %v967
  %v1016 = vsub.f32 %v536, %v968
  %v1017 = vsub.f32 %v537, %v969
  %v1018 = vsub.f32 %v538, %v970
  %v1019 = vsub.f32 %v539, %v971
  %v1020 = vsub.f32 %v540, %v972
  %v1021 = vsub.f32 %v541, %v973
  %v1022 = vsub.f32 %v542, %v974
  %v1023 = vsub.f32 %v543, %v975
  %v1024 = vsub.f32 %v544, %v976
  %v1025 = vsub.f32 %v545, %v977
  %v1026 = vsub.f32 %v546, %v978
  %v1027 = vsub.f32 %v547, %v979
  %v1028 = vsub.f32 %v548, %v980
  %v1029 = vmul.f32 %v981, %v981
  %v1030 = vmul.f32 %v982, %v982
  %v1031 = vmul.f32 %v983, %v983
  %v1032 = vmul.f32 %v984, %v984
  %v1033 = vmul.f32 %v985, %v985
  %v1034 = vmul.f32 %v986, %v986
  %v1035 = vmul.f32 %v987, %v987
  %v1036 = vmul.f32 %v988, %v988
  %v1037 = vmul.f32 %v989, %v989
  %v1038 = vmul.f32 %v990, %v990
  %v1039 = vmul.f32 %v991, %v991
  %v1040 = vmul.f32 %v992, %v992
  %v1041 = vmul.f32 %v993, %v993
  %v1042 = vmul.f32 %v994, %v994
  %v1043 = vmul.f32 %v995, %v995
  %v1044 = vmul.f32 %v996, %v996
  %v1045 = vmul.f32 %v997, %v997
  %v1046 = vmul.f32 %v998, %v998
  %v1047 = vmul.f32 %v999, %v999
  %v1048 = vmul.f32 %v1000, %v1000
  %v1049 = vmul.f32 %v1001, %v1001
  %v1050 = vmul.f32 %v1002, %v1002
  %v1051 = vmul.f32 %v1003, %v1003
  %v1052 = vmul.f32 %v1004, %v1004
  %v1053 = vmul.f32 %v1005, %v1005
  %v1054 = vmul.f32 %v1006, %v1006
  %v1055 = vmul.f32 %v1007, %v1007
  %v1056 = vmul.f32 %v1008, %v1008
  %v1057 = vmul.f32 %v1009, %v1009
  %v1058 = vmul.f32 %v1010, %v1010
  %v1059 = vmul.f32 %v1011, %v1011
  %v1060 = vmul.f32 %v1012, %v1012
  %v1061 = vmul.f32 %v1013, %v1013
  %v1062 = vmul.f32 %v1014, %v1014
  %v1063 = vmul.f32 %v1015, %v1015
  %v1064 = vmul.f32 %v1016, %v1016
  %v1065 = vmul.f32 %v1017, %v1017
  %v1066 = vmul.f32 %v1018, %v1018
  %v1067 = vmul.f32 %v1019, %v1019
  %v1068 = vmul.f32 %v1020, %v1020
  %v1069 = vmul.f32 %v1021, %v1021
  %v1070 = vmul.f32 %v1022, %v1022
  %v1071 = vmul.f32 %v1023, %v1023
  %v1072 = vmul.f32 %v1024, %v1024
  %v1073 = vmul.f32 %v1025, %v1025
  %v1074 = vmul.f32 %v1026, %v1026
  %v1075 = vmul.f32 %v1027, %v1027
  %v1076 = vmul.f32 %v1028, %v1028
  %v1077 = vadd.f32 %v1029, %v1045
  %v1078 = vadd.f32 %v1077, %v1061
  %v1079 = vadd.f32 %v1030, %v1046
  %v1080 = vadd.f32 %v1079, %v1062
  %v1081 = vadd.f32 %v1031, %v1047
  %v1082 = vadd.f32 %v1081, %v1063
  %v1083 = vadd.f32 %v1032, %v1048
  %v1084 = vadd.f32 %v1083, %v1064
  %v1085 = vadd.f32 %v1033, %v1049
  %v1086 = vadd.f32 %v1085, %v1065
  %v1087 = vadd.f32 %v1034, %v1050
  %v1088 = vadd.f32 %v1087, %v1066
  %v1089 = vadd.f32 %v1035, %v1051
  %v1090 = vadd.f32 %v1089, %v1067
  %v1091 = vadd.f32 %v1036, %v1052
  %v1092 = vadd.f32 %v1091, %v1068
  %v1093 = vadd.f32 %v1037, %v1053
  %v1094 = vadd.f32 %v1093, %v1069
  %v1095 = vadd.f32 %v1038, %v1054
  %v1096 = vadd.f32 %v1095, %v1070
  %v1097 = vadd.f32 %v1039, %v1055
  %v1098 = vadd.f32 %v1097, %v1071
  %v1099 = vadd.f32 %v1040, %v1056
  %v1100 = vadd.f32 %v1099, %v1072
  %v1101 = vadd.f32 %v1041, %v1057
  %v1102 = vadd.f32 %v1101, %v1073
  %v1103 = vadd.f32 %v1042, %v1058
  %v1104 = vadd.f32 %v1103, %v1074
  %v1105 = vadd.f32 %v1043, %v1059
  %v1106 = vadd.f32 %v1105, %v1075
  %v1107 = vadd.f32 %v1044, %v1060
  %v1108 = vadd.f32 %v1107, %v1076
  %v1109 = vrsqrt.pop %v1078
  %v1110 = vmul.f32 %v1078, %v1109
  %vm1111 = vcmp.eq.f32.partialorder %v1078, inf
  %v1112 = vsel %vm1111, %v1078, %v1110
  %vm1113 = vcmp.eq.f32.partialorder %v1078, 0.0
  %v1114 = vand.u32 %v1078, 2147483648
  %v1115 = vsel %vm1113, %v1114, %v1112
  %v1116 = vrsqrt.pop %v1080
  %v1117 = vmul.f32 %v1080, %v1116
  %vm1118 = vcmp.eq.f32.partialorder %v1080, inf
  %v1119 = vsel %vm1118, %v1080, %v1117
  %vm1120 = vcmp.eq.f32.partialorder %v1080, 0.0
  %v1121 = vand.u32 %v1080, 2147483648
  %v1122 = vsel %vm1120, %v1121, %v1119
  %v1123 = vrsqrt.pop %v1082
  %v1124 = vmul.f32 %v1082, %v1123
  %vm1125 = vcmp.eq.f32.partialorder %v1082, inf
  %v1126 = vsel %vm1125, %v1082, %v1124
  %vm1127 = vcmp.eq.f32.partialorder %v1082, 0.0
  %v1128 = vand.u32 %v1082, 2147483648
  %v1129 = vsel %vm1127, %v1128, %v1126
  %v1130 = vrsqrt.pop %v1084
  %v1131 = vmul.f32 %v1084, %v1130
  %vm1132 = vcmp.eq.f32.partialorder %v1084, inf
  %v1133 = vsel %vm1132, %v1084, %v1131
  %vm1134 = vcmp.eq.f32.partialorder %v1084, 0.0
  %v1135 = vand.u32 %v1084, 2147483648
  %v1136 = vsel %vm1134, %v1135, %v1133
  %v1137 = vrsqrt.pop %v1086
  %v1138 = vmul.f32 %v1086, %v1137
  %vm1139 = vcmp.eq.f32.partialorder %v1086, inf
  %v1140 = vsel %vm1139, %v1086, %v1138
  %vm1141 = vcmp.eq.f32.partialorder %v1086, 0.0
  %v1142 = vand.u32 %v1086, 2147483648
  %v1143 = vsel %vm1141, %v1142, %v1140
  %v1144 = vrsqrt.pop %v1088
  %v1145 = vmul.f32 %v1088, %v1144
  %vm1146 = vcmp.eq.f32.partialorder %v1088, inf
  %v1147 = vsel %vm1146, %v1088, %v1145
  %vm1148 = vcmp.eq.f32.partialorder %v1088, 0.0
  %v1149 = vand.u32 %v1088, 2147483648
  %v1150 = vsel %vm1148, %v1149, %v1147
  %v1151 = vrsqrt.pop %v1090
  %v1152 = vmul.f32 %v1090, %v1151
  %vm1153 = vcmp.eq.f32.partialorder %v1090, inf
  %v1154 = vsel %vm1153, %v1090, %v1152
  %vm1155 = vcmp.eq.f32.partialorder %v1090, 0.0
  %v1156 = vand.u32 %v1090, 2147483648
  %v1157 = vsel %vm1155, %v1156, %v1154
  %v1158 = vrsqrt.pop %v1092
  %v1159 = vmul.f32 %v1092, %v1158
  %vm1160 = vcmp.eq.f32.partialorder %v1092, inf
  %v1161 = vsel %vm1160, %v1092, %v1159
  %vm1162 = vcmp.eq.f32.partialorder %v1092, 0.0
  %v1163 = vand.u32 %v1092, 2147483648
  %v1164 = vsel %vm1162, %v1163, %v1161
  %v1165 = vrsqrt.pop %v1094
  %v1166 = vmul.f32 %v1094, %v1165
  %vm1167 = vcmp.eq.f32.partialorder %v1094, inf
  %v1168 = vsel %vm1167, %v1094, %v1166
  %vm1169 = vcmp.eq.f32.partialorder %v1094, 0.0
  %v1170 = vand.u32 %v1094, 2147483648
  %v1171 = vsel %vm1169, %v1170, %v1168
  %v1172 = vrsqrt.pop %v1096
  %v1173 = vmul.f32 %v1096, %v1172
  %vm1174 = vcmp.eq.f32.partialorder %v1096, inf
  %v1175 = vsel %vm1174, %v1096, %v1173
  %vm1176 = vcmp.eq.f32.partialorder %v1096, 0.0
  %v1177 = vand.u32 %v1096, 2147483648
  %v1178 = vsel %vm1176, %v1177, %v1175
  %v1179 = vrsqrt.pop %v1098
  %v1180 = vmul.f32 %v1098, %v1179
  %vm1181 = vcmp.eq.f32.partialorder %v1098, inf
  %v1182 = vsel %vm1181, %v1098, %v1180
  %vm1183 = vcmp.eq.f32.partialorder %v1098, 0.0
  %v1184 = vand.u32 %v1098, 2147483648
  %v1185 = vsel %vm1183, %v1184, %v1182
  %v1186 = vrsqrt.pop %v1100
  %v1187 = vmul.f32 %v1100, %v1186
  %vm1188 = vcmp.eq.f32.partialorder %v1100, inf
  %v1189 = vsel %vm1188, %v1100, %v1187
  %vm1190 = vcmp.eq.f32.partialorder %v1100, 0.0
  %v1191 = vand.u32 %v1100, 2147483648
  %v1192 = vsel %vm1190, %v1191, %v1189
  %v1193 = vrsqrt.pop %v1102
  %v1194 = vmul.f32 %v1102, %v1193
  %vm1195 = vcmp.eq.f32.partialorder %v1102, inf
  %v1196 = vsel %vm1195, %v1102, %v1194
  %vm1197 = vcmp.eq.f32.partialorder %v1102, 0.0
  %v1198 = vand.u32 %v1102, 2147483648
  %v1199 = vsel %vm1197, %v1198, %v1196
  %v1200 = vrsqrt.pop %v1104
  %v1201 = vmul.f32 %v1104, %v1200
  %vm1202 = vcmp.eq.f32.partialorder %v1104, inf
  %v1203 = vsel %vm1202, %v1104, %v1201
  %vm1204 = vcmp.eq.f32.partialorder %v1104, 0.0
  %v1205 = vand.u32 %v1104, 2147483648
  %v1206 = vsel %vm1204, %v1205, %v1203
  %v1207 = vrsqrt.pop %v1106
  %v1208 = vmul.f32 %v1106, %v1207
  %vm1209 = vcmp.eq.f32.partialorder %v1106, inf
  %v1210 = vsel %vm1209, %v1106, %v1208
  %vm1211 = vcmp.eq.f32.partialorder %v1106, 0.0
  %v1212 = vand.u32 %v1106, 2147483648
  %v1213 = vsel %vm1211, %v1212, %v1210
  %v1214 = vrsqrt.pop %v1108
  %v1215 = vmul.f32 %v1108, %v1214
  %vm1216 = vcmp.eq.f32.partialorder %v1108, inf
  %v1217 = vsel %vm1216, %v1108, %v1215
  %vm1218 = vcmp.eq.f32.partialorder %v1108, 0.0
  %v1219 = vand.u32 %v1108, 2147483648
  %v1220 = vsel %vm1218, %v1219, %v1217
  %v1221 = vld [vmem:[%s2] sm:$0xff]
  %v1222 = vld [vmem:[%s2 + $0x8] sm:$0xff]
  %v1223 = vld [vmem:[%s2 + $0x10] sm:$0xff]
  %v1224 = vld [vmem:[%s2 + $0x18] sm:$0xff]
  %v1225 = vld [vmem:[%s2 + $0x20] sm:$0xff]
  %v1226 = vld [vmem:[%s2 + $0x28] sm:$0xff]
  %v1227 = vld [vmem:[%s2 + $0x30] sm:$0xff]
  %v1228 = vld [vmem:[%s2 + $0x38] sm:$0xff]
  %v1229 = vld [vmem:[%s2 + $0x40] sm:$0xff]
  %v1230 = vld [vmem:[%s2 + $0x48] sm:$0xff]
  %v1231 = vld [vmem:[%s2 + $0x50] sm:$0xff]
  %v1232 = vld [vmem:[%s2 + $0x58] sm:$0xff]
  %v1233 = vld [vmem:[%s2 + $0x60] sm:$0xff]
  %v1234 = vld [vmem:[%s2 + $0x68] sm:$0xff]
  %v1235 = vld [vmem:[%s2 + $0x70] sm:$0xff]
  %v1236 = vld [vmem:[%s2 + $0x78] sm:$0xff]
  %v1237 = vmul.f32 %v1221, %v1115
  %v1238 = vmul.f32 %v1222, %v1122
  %v1239 = vmul.f32 %v1223, %v1129
  %v1240 = vmul.f32 %v1224, %v1136
  %v1241 = vmul.f32 %v1225, %v1143
  %v1242 = vmul.f32 %v1226, %v1150
  %v1243 = vmul.f32 %v1227, %v1157
  %v1244 = vmul.f32 %v1228, %v1164
  %v1245 = vmul.f32 %v1229, %v1171
  %v1246 = vmul.f32 %v1230, %v1178
  %v1247 = vmul.f32 %v1231, %v1185
  %v1248 = vmul.f32 %v1232, %v1192
  %v1249 = vmul.f32 %v1233, %v1199
  %v1250 = vmul.f32 %v1234, %v1206
  %v1251 = vmul.f32 %v1235, %v1213
  %v1252 = vmul.f32 %v1236, %v1220
  %v1253 = vlog2.pop %v1221
  %v1254 = vmul.f32 %v1253, 0.6931472
  %v1255 = vlog2.pop %v1222
  %v1256 = vmul.f32 %v1255, 0.6931472
  %v1257 = vlog2.pop %v1223
  %v1258 = vmul.f32 %v1257, 0.6931472
  %v1259 = vlog2.pop %v1224
  %v1260 = vmul.f32 %v1259, 0.6931472
  %v1261 = vlog2.pop %v1225
  %v1262 = vmul.f32 %v1261, 0.6931472
  %v1263 = vlog2.pop %v1226
  %v1264 = vmul.f32 %v1263, 0.6931472
  %v1265 = vlog2.pop %v1227
  %v1266 = vmul.f32 %v1265, 0.6931472
  %v1267 = vlog2.pop %v1228
  %v1268 = vmul.f32 %v1267, 0.6931472
  %v1269 = vlog2.pop %v1229
  %v1270 = vmul.f32 %v1269, 0.6931472
  %v1271 = vlog2.pop %v1230
  %v1272 = vmul.f32 %v1271, 0.6931472
  %v1273 = vlog2.pop %v1231
  %v1274 = vmul.f32 %v1273, 0.6931472
  %v1275 = vlog2.pop %v1232
  %v1276 = vmul.f32 %v1275, 0.6931472
  %v1277 = vlog2.pop %v1233
  %v1278 = vmul.f32 %v1277, 0.6931472
  %v1279 = vlog2.pop %v1234
  %v1280 = vmul.f32 %v1279, 0.6931472
  %v1281 = vlog2.pop %v1235
  %v1282 = vmul.f32 %v1281, 0.6931472
  %v1283 = vlog2.pop %v1236
  %v1284 = vmul.f32 %v1283, 0.6931472
  %v1285 = vmul.f32 %v1254, 0.2
  %v1286 = vmul.f32 %v1256, 0.2
  %v1287 = vmul.f32 %v1258, 0.2
  %v1288 = vmul.f32 %v1260, 0.2
  %v1289 = vmul.f32 %v1262, 0.2
  %v1290 = vmul.f32 %v1264, 0.2
  %v1291 = vmul.f32 %v1266, 0.2
  %v1292 = vmul.f32 %v1268, 0.2
  %v1293 = vmul.f32 %v1270, 0.2
  %v1294 = vmul.f32 %v1272, 0.2
  %v1295 = vmul.f32 %v1274, 0.2
  %v1296 = vmul.f32 %v1276, 0.2
  %v1297 = vmul.f32 %v1278, 0.2
  %v1298 = vmul.f32 %v1280, 0.2
  %v1299 = vmul.f32 %v1282, 0.2
  %v1300 = vmul.f32 %v1284, 0.2
  %v1301 = vsub.f32 %v1237, %v1285
  %v1302 = vsub.f32 %v1238, %v1286
  %v1303 = vsub.f32 %v1239, %v1287
  %v1304 = vsub.f32 %v1240, %v1288
  %v1305 = vsub.f32 %v1241, %v1289
  %v1306 = vsub.f32 %v1242, %v1290
  %v1307 = vsub.f32 %v1243, %v1291
  %v1308 = vsub.f32 %v1244, %v1292
  %v1309 = vsub.f32 %v1245, %v1293
  %v1310 = vsub.f32 %v1246, %v1294
  %v1311 = vsub.f32 %v1247, %v1295
  %v1312 = vsub.f32 %v1248, %v1296
  %v1313 = vsub.f32 %v1249, %v1297
  %v1314 = vsub.f32 %v1250, %v1298
  %v1315 = vsub.f32 %v1251, %v1299
  %v1316 = vsub.f32 %v1252, %v1300
  %v1317 = vld [vmem:[%s3] sm:$0xff]
  %v1318 = vld [vmem:[%s3 + $0x8] sm:$0xff]
  %v1319 = vld [vmem:[%s3 + $0x10] sm:$0xff]
  %v1320 = vld [vmem:[%s3 + $0x18] sm:$0xff]
  %vm1321 = vnez %v1317
  %vm1322 = vnez %v1318
  %vm1323 = vnez %v1319
  %vm1324 = vnez %v1320
  %v1325 = vsel %vm1321, 16843009, 0
  %v1326 = vsel %vm1322, 16843009, 0
  %v1327 = vsel %vm1323, 16843009, 0
  %v1328 = vsel %vm1324, 16843009, 0
  %v1329 = vunpack.c.0.s8 %v1325
  %v1330 = vunpack.c.0.s8 %v1326
  %v1331 = vunpack.c.0.s8 %v1327
  %v1332 = vunpack.c.0.s8 %v1328
  %v1333 = vunpack.c.1.s8 %v1325
  %v1334 = vunpack.c.1.s8 %v1326
  %v1335 = vunpack.c.1.s8 %v1327
  %v1336 = vunpack.c.1.s8 %v1328
  %v1337 = vunpack.c.2.s8 %v1325
  %v1338 = vunpack.c.2.s8 %v1326
  %v1339 = vunpack.c.2.s8 %v1327
  %v1340 = vunpack.c.2.s8 %v1328
  %v1341 = vunpack.c.3.s8 %v1325
  %v1342 = vunpack.c.3.s8 %v1326
  %v1343 = vunpack.c.3.s8 %v1327
  %v1344 = vunpack.c.3.s8 %v1328
  %v1345 = vpack.c.b16 %v1330, %v1329
  %v1346 = vpack.c.b16 %v1332, %v1331
  %v1347 = vpack.c.b8 %v1346, %v1345
  %v1348 = vpack.c.b16 %v1334, %v1333
  %v1349 = vpack.c.b16 %v1336, %v1335
  %v1350 = vpack.c.b8 %v1349, %v1348
  %v1351 = vpack.c.b16 %v1338, %v1337
  %v1352 = vpack.c.b16 %v1340, %v1339
  %v1353 = vpack.c.b8 %v1352, %v1351
  %v1354 = vpack.c.b16 %v1342, %v1341
  %v1355 = vpack.c.b16 %v1344, %v1343
  %v1356 = vpack.c.b8 %v1355, %v1354
  %vm1357 = vnez %v1347
  %vm1358 = vnez %v1350
  %vm1359 = vnez %v1353
  %vm1360 = vnez %v1356
  %v1361 = vsel %vm1357, 16843009, 0
  %v1362 = vsel %vm1358, 16843009, 0
  %v1363 = vsel %vm1359, 16843009, 0
  %v1364 = vsel %vm1360, 16843009, 0
  %v1365 = vunpack.c.0.s8 %v1361
  %v1366 = vunpack.c.1.s8 %v1361
  %v1367 = vunpack.c.2.s8 %v1361
  %v1368 = vunpack.c.3.s8 %v1361
  %v1369 = vunpack.c.0.s8 %v1362
  %v1370 = vunpack.c.1.s8 %v1362
  %v1371 = vunpack.c.2.s8 %v1362
  %v1372 = vunpack.c.3.s8 %v1362
  %v1373 = vunpack.c.0.s8 %v1363
  %v1374 = vunpack.c.1.s8 %v1363
  %v1375 = vunpack.c.2.s8 %v1363
  %v1376 = vunpack.c.3.s8 %v1363
  %v1377 = vunpack.c.0.s8 %v1364
  %v1378 = vunpack.c.1.s8 %v1364
  %v1379 = vunpack.c.2.s8 %v1364
  %v1380 = vunpack.c.3.s8 %v1364
  %vm1381 = vcmp.ne.s32.totalorder %v1365, 0
  %vm1382 = vcmp.ne.s32.totalorder %v1366, 0
  %vm1383 = vcmp.ne.s32.totalorder %v1367, 0
  %vm1384 = vcmp.ne.s32.totalorder %v1368, 0
  %vm1385 = vcmp.ne.s32.totalorder %v1369, 0
  %vm1386 = vcmp.ne.s32.totalorder %v1370, 0
  %vm1387 = vcmp.ne.s32.totalorder %v1371, 0
  %vm1388 = vcmp.ne.s32.totalorder %v1372, 0
  %vm1389 = vcmp.ne.s32.totalorder %v1373, 0
  %vm1390 = vcmp.ne.s32.totalorder %v1374, 0
  %vm1391 = vcmp.ne.s32.totalorder %v1375, 0
  %vm1392 = vcmp.ne.s32.totalorder %v1376, 0
  %vm1393 = vcmp.ne.s32.totalorder %v1377, 0
  %vm1394 = vcmp.ne.s32.totalorder %v1378, 0
  %vm1395 = vcmp.ne.s32.totalorder %v1379, 0
  %vm1396 = vcmp.ne.s32.totalorder %v1380, 0
  %v1397 = vsel %vm1381, %v1301, 0.0
  %v1398 = vsel %vm1382, %v1302, 0.0
  %v1399 = vsel %vm1383, %v1303, 0.0
  %v1400 = vsel %vm1384, %v1304, 0.0
  %v1401 = vsel %vm1385, %v1305, 0.0
  %v1402 = vsel %vm1386, %v1306, 0.0
  %v1403 = vsel %vm1387, %v1307, 0.0
  %v1404 = vsel %vm1388, %v1308, 0.0
  %v1405 = vsel %vm1389, %v1309, 0.0
  %v1406 = vsel %vm1390, %v1310, 0.0
  %v1407 = vsel %vm1391, %v1311, 0.0
  %v1408 = vsel %vm1392, %v1312, 0.0
  %v1409 = vsel %vm1393, %v1313, 0.0
  %v1410 = vsel %vm1394, %v1314, 0.0
  %v1411 = vsel %vm1395, %v1315, 0.0
  %v1412 = vsel %vm1396, %v1316, 0.0
  %1413 = vst [vmem:[%s4] sm:$0xff] %v1397
  %1414 = vst [vmem:[%s4 + $0x8] sm:$0xff] %v1398
  %1415 = vst [vmem:[%s4 + $0x10] sm:$0xff] %v1399
  %1416 = vst [vmem:[%s4 + $0x18] sm:$0xff] %v1400
  %1417 = vst [vmem:[%s4 + $0x20] sm:$0xff] %v1401
  %1418 = vst [vmem:[%s4 + $0x28] sm:$0xff] %v1402
  %1419 = vst [vmem:[%s4 + $0x30] sm:$0xff] %v1403
  %1420 = vst [vmem:[%s4 + $0x38] sm:$0xff] %v1404
  %1421 = vst [vmem:[%s4 + $0x40] sm:$0xff] %v1405
  %1422 = vst [vmem:[%s4 + $0x48] sm:$0xff] %v1406
  %1423 = vst [vmem:[%s4 + $0x50] sm:$0xff] %v1407
  %1424 = vst [vmem:[%s4 + $0x58] sm:$0xff] %v1408
  %1425 = vst [vmem:[%s4 + $0x60] sm:$0xff] %v1409
  %1426 = vst [vmem:[%s4 + $0x68] sm:$0xff] %v1410
  %1427 = vst [vmem:[%s4 + $0x70] sm:$0xff] %v1411
  %1428 = vst [vmem:[%s4 + $0x78] sm:$0xff] %v1412
  %v1429 = vsel %vm1381, 1, 0
  %v1430 = vsel %vm1382, 1, 0
  %v1431 = vsel %vm1383, 1, 0
  %v1432 = vsel %vm1384, 1, 0
  %v1433 = vsel %vm1385, 1, 0
  %v1434 = vsel %vm1386, 1, 0
  %v1435 = vsel %vm1387, 1, 0
  %v1436 = vsel %vm1388, 1, 0
  %v1437 = vsel %vm1389, 1, 0
  %v1438 = vsel %vm1390, 1, 0
  %v1439 = vsel %vm1391, 1, 0
  %v1440 = vsel %vm1392, 1, 0
  %v1441 = vsel %vm1393, 1, 0
  %v1442 = vsel %vm1394, 1, 0
  %v1443 = vsel %vm1395, 1, 0
  %v1444 = vsel %vm1396, 1, 0
  %v1445 = vcvt.s32.f32 %v1429
  %v1446 = vcvt.s32.f32 %v1430
  %v1447 = vcvt.s32.f32 %v1431
  %v1448 = vcvt.s32.f32 %v1432
  %v1449 = vcvt.s32.f32 %v1433
  %v1450 = vcvt.s32.f32 %v1434
  %v1451 = vcvt.s32.f32 %v1435
  %v1452 = vcvt.s32.f32 %v1436
  %v1453 = vcvt.s32.f32 %v1437
  %v1454 = vcvt.s32.f32 %v1438
  %v1455 = vcvt.s32.f32 %v1439
  %v1456 = vcvt.s32.f32 %v1440
  %v1457 = vcvt.s32.f32 %v1441
  %v1458 = vcvt.s32.f32 %v1442
  %v1459 = vcvt.s32.f32 %v1443
  %v1460 = vcvt.s32.f32 %v1444
  %v1461 = vadd.f32 %v1445, %v1446
  %v1462 = vadd.f32 %v1461, %v1447
  %v1463 = vadd.f32 %v1462, %v1448
  %v1464 = vadd.f32 %v1463, %v1449
  %v1465 = vadd.f32 %v1464, %v1450
  %v1466 = vadd.f32 %v1465, %v1451
  %v1467 = vadd.f32 %v1466, %v1452
  %v1468 = vadd.f32 %v1467, %v1453
  %v1469 = vadd.f32 %v1468, %v1454
  %v1470 = vadd.f32 %v1469, %v1455
  %v1471 = vadd.f32 %v1470, %v1456
  %v1472 = vadd.f32 %v1471, %v1457
  %v1473 = vadd.f32 %v1472, %v1458
  %v1474 = vadd.f32 %v1473, %v1459
  %v1475 = vadd.f32 %v1474, %v1460
  %1476 = vadd.xlane.f32.xlu0 %v1475
  %v1477 = vpop.xlane.xlu0 %1476
  %v1478 = vrot.slane %v1477, 4
  %v1479 = vadd.f32 %v1477, %v1478
  %v1480 = vrot.slane %v1479, 2
  %v1481 = vadd.f32 %v1479, %v1480
  %v1482 = vrot.slane %v1481, 1
  %v1483 = vadd.f32 %v1481, %v1482
  %s1484 = vtos %v1483
  %v1485 = vadd.f32 %v1397, %v1398
  %v1486 = vadd.f32 %v1485, %v1399
  %v1487 = vadd.f32 %v1486, %v1400
  %v1488 = vadd.f32 %v1487, %v1401
  %v1489 = vadd.f32 %v1488, %v1402
  %v1490 = vadd.f32 %v1489, %v1403
  %v1491 = vadd.f32 %v1490, %v1404
  %v1492 = vadd.f32 %v1491, %v1405
  %v1493 = vadd.f32 %v1492, %v1406
  %v1494 = vadd.f32 %v1493, %v1407
  %v1495 = vadd.f32 %v1494, %v1408
  %v1496 = vadd.f32 %v1495, %v1409
  %v1497 = vadd.f32 %v1496, %v1410
  %v1498 = vadd.f32 %v1497, %v1411
  %v1499 = vadd.f32 %v1498, %v1412
  %1500 = vadd.xlane.f32.xlu0 %v1499
  %v1501 = vpop.xlane.xlu0 %1500
  %v1502 = vrot.slane %v1501, 4
  %v1503 = vadd.f32 %v1501, %v1502
  %v1504 = vrot.slane %v1503, 2
  %v1505 = vadd.f32 %v1503, %v1504
  %v1506 = vrot.slane %v1505, 1
  %v1507 = vadd.f32 %v1505, %v1506
  %s1508 = vtos %v1507
  %v1509 = vlaneseq
  %v1510 = vshrl.u32 %v1509, 7
  %v1511 = vlaneseq
  %v1512 = vand.u32 %v1511, 127
  %vm1513 = vcmp.eq.s32.totalorder %v1510, 0
  %vm1514 = vcmp.eq.s32.totalorder %v1512, 0
  %vm1515 = vmand %vm1513, %vm1514
  %v1516 = vstv %s1484
  %v1517 = vsel %vm1515, %v1516, 0.0
  %vm1518 = vcmp.eq.s32.totalorder %v1512, 1
  %vm1519 = vmand %vm1513, %vm1518
  %v1520 = vstv %s1508
  %v1521 = vsel %vm1519, %v1520, %v1517
  %1522 = vst [vmem:[%s5] sm:$0xff] %v1521
  // Predicated region
  $region18: #{ray_completion_loss.1} parent=0 // pred_check
    _
  $region19: #{ray_completion_loss.1} parent=0 // pred_check_branch
    %1524 = sbr.rel (0) target = $region21
  $region20: #{ray_completion_loss.1} parent=0 // pred_region
    _
  $region21: #{ray_completion_loss.1} parent=0 // pred_fallthru
    _
  // Predicated region
  $region22: #{ray_completion_loss.1} parent=0 // pred_check
    _
  $region23: #{ray_completion_loss.1} parent=0 // pred_check_branch
    %1526 = sbr.rel (0) target = $region25
  $region24: #{ray_completion_loss.1} parent=0 // pred_region
    _
  $region25: #{ray_completion_loss.1} parent=0 // pred_fallthru
    _
  // Predicated region
  $region26: #{ray_completion_loss.1} parent=0 // pred_check
    _
  $region27: #{ray_completion_loss.1} parent=0 // pred_check_branch
    %1528 = sbr.rel (0) target = $region29
  $region28: #{ray_completion_loss.1} parent=0 // pred_region
    _
  $region29: #{ray_completion_loss.1} parent=0 // pred_fallthru
    _
  // Predicated region
  $region30: #{ray_completion_loss.1} parent=0 // pred_check
    _
  $region31: #{ray_completion_loss.1} parent=0 // pred_check_branch
    %1530 = sbr.rel (0) target = $region33
  $region32: #{ray_completion_loss.1} parent=0 // pred_region
    _
  $region33: #{ray_completion_loss.1} parent=0 // pred_fallthru
    _

</llo_original>
